<compile_context>
chip_gen: v6e
topology: v6e:2x2x1
jax: 0.10.0
libtpu: 0.0.40
codegen_flags: <defaults>
</compile_context>

<pallas_src>
import functools

import jax
import jax.numpy as jnp
from jax.experimental import pallas as pl
from jax.experimental.pallas import tpu as pltpu


IN_DIM = 20
HID_DIM = 400
OUT_DIM = 784
HID_PAD = 512          # 400 rounded up to a multiple of 128
MAX_BATCH_TILE = 512   # default batch tile cap


def _round_up(n, m):
    return ((n + m - 1) // m) * m


def _bf16_eup_available():
    """bf16 VPU/EUP exist on v6e and newer; not on v5e / v5p / v4."""
    try:
        kind = jax.devices()[0].device_kind.lower()
    except Exception:
        return False
    return ("v6" in kind) or ("v7" in kind)


def _choose_batch_tile(B, block_b):
    """Pick a batch tile (multiple of 16) balancing per-step overhead,
    batch-padding waste, and (for v7x megacore) having >= 2 grid steps."""
    B = max(B, 1)
    if B <= 64:
        return min(_round_up(B, 16), block_b)          # tiny batch: one small tile
    candidates = [c for c in (1024, 512, 256, 128, 64) if c <= block_b]
    # Largest tile with <= 15% padding waste and >= 2 grid steps.
    for tb in candidates:
        Bp = _round_up(B, tb)
        if Bp <= 1.15 * B and Bp // tb >= 2:
            return tb
    # Next best: one full-batch tile (minimal padding) if it fits the cap.
    single = _round_up(B, 16)
    if single <= block_b:
        return single
    # Otherwise largest tile with <= 15% waste, else minimise waste.
    for tb in candidates + [32, 16]:
        if _round_up(B, tb) <= 1.15 * B:
            return tb
    return 16


def prepare_params(w1, b1, w2, b2):
    """One-time padding + bf16 cast of the weights (store these, reuse per call).

    w1: (20, 400), b1: (400,), w2: (400, 784), b2: (784,)  (PyTorch weight.T layout)
    """
    w1p = (
        jnp.zeros((IN_DIM, HID_PAD), jnp.bfloat16)
        .at[:, :HID_DIM]
        .set(w1.astype(jnp.bfloat16))
    )
    b1p = jnp.zeros((1, HID_PAD), jnp.float32).at[:, :HID_DIM].set(b1[None, :])
    w2p = (
        jnp.zeros((HID_PAD, OUT_DIM), jnp.bfloat16)
        .at[:HID_DIM, :]
        .set(w2.astype(jnp.bfloat16))
    )
    b2p = b2[None, :].astype(jnp.float32)
    return w1p, b1p, w2p, b2p


def decoder_kernel(x_ref, w1_ref, b1_ref, w2_ref, b2_ref, o_ref, *, epi_dtype):
    # Layer 1: X @ W1 + b1, ReLU   (bf16 MXU matmul, f32 accumulate)
    x = x_ref[...].astype(jnp.bfloat16)
    h1 = jnp.dot(x, w1_ref[...], preferred_element_type=jnp.float32)
    h1 = h1 + b1_ref[...]                      # (TB, 512) + (1, 512)
    a1 = jnp.maximum(h1, 0.0).astype(jnp.bfloat16)
    # Layer 2: a1 @ W2 + b2   (bf16 MXU matmul, f32 accumulate)
    h2 = jnp.dot(a1, w2_ref[...], preferred_element_type=jnp.float32)
    h2 = (h2 + b2_ref[...]).astype(epi_dtype)  # (TB, 784) + (1, 784)
    # Sigmoid via a SINGLE EUP transcendental: sigmoid(x) = 0.5*tanh(0.5*x)+0.5
    a2 = 0.5 * jnp.tanh(0.5 * h2) + 0.5
    o_ref[...] = a2.astype(o_ref.dtype)


@functools.partial(
    jax.jit, static_argnames=("block_b", "out_dtype", "bf16_epilogue")
)
def decoder_forward(
    x, w1p, b1p, w2p, b2p, *,
    block_b=MAX_BATCH_TILE, out_dtype=jnp.bfloat16, bf16_epilogue=True,
):
    """x: (B, 20) float32. Padded params from `prepare_params`. Returns (B, 784)."""
    B = x.shape[0]
    tb = _choose_batch_tile(B, block_b)
    Bp = _round_up(max(B, 1), tb)

    xp = x
    if Bp != B:
        xp = jnp.pad(x, ((0, Bp - B), (0, 0)))

    epi_dtype = jnp.bfloat16 if bf16_epilogue else jnp.float32
    kernel = functools.partial(decoder_kernel, epi_dtype=epi_dtype)

    out_p = pl.pallas_call(
        kernel,
        out_shape=jax.ShapeDtypeStruct((Bp, OUT_DIM), out_dtype),
        grid_spec=pltpu.PrefetchScalarGridSpec(
            num_scalar_prefetch=0,
            grid=(Bp // tb,),
            in_specs=[
                # x tile marches with the grid; feature dim is the full 20 (no pad).
                pl.BlockSpec((tb, IN_DIM), lambda i: (i, 0)),
                # Weights / biases: constant block index -> stay resident in VMEM.
                pl.BlockSpec((IN_DIM, HID_PAD), lambda i: (0, 0)),
                pl.BlockSpec((1, HID_PAD), lambda i: (0, 0)),
                pl.BlockSpec((HID_PAD, OUT_DIM), lambda i: (0, 0)),
                pl.BlockSpec((1, OUT_DIM), lambda i: (0, 0)),
            ],
            out_specs=pl.BlockSpec((tb, OUT_DIM), lambda i: (i, 0)),
        ),
        compiler_params=pltpu.CompilerParams(
            dimension_semantics=("parallel",),     # batch tiles are independent
            vmem_limit_bytes=32 * 1024 * 1024,     # headroom for TB=512 tiles
        ),
    )(xp, w1p, b1p, w2p, b2p)

    if Bp != B:
        out_p = out_p[:B]
    return out_p


def init_params(key):
    """nn.Linear default init (U[-1/sqrt(fan_in), 1/sqrt(fan_in)]).

    Weights are stored as (in_features, out_features) = PyTorch weight.T.
    """
    k1, k2, k3, k4 = jax.random.split(key, 4)
    bound1 = 1.0 / jnp.sqrt(IN_DIM)
    bound2 = 1.0 / jnp.sqrt(HID_DIM)
    w1 = jax.random.uniform(k1, (IN_DIM, HID_DIM), jnp.float32, -bound1, bound1)
    b1 = jax.random.uniform(k2, (HID_DIM,), jnp.float32, -bound1, bound1)
    w2 = jax.random.uniform(k3, (HID_DIM, OUT_DIM), jnp.float32, -bound2, bound2)
    b2 = jax.random.uniform(k4, (OUT_DIM,), jnp.float32, -bound2, bound2)
    return w1, b1, w2, b2


def reference_forward(x, w1, b1, w2, b2):
    h1 = x @ w1 + b1
    a1 = jnp.maximum(h1, 0.0)
    h2 = a1 @ w2 + b2
    return jax.nn.sigmoid(h2)


if __name__ == "__main__":
    key = jax.random.PRNGKey(0)
    kx, kp = jax.random.split(key)

    B = 8  # batch size
    x = jax.random.normal(kx, (B, IN_DIM), jnp.float32)
    w1, b1, w2, b2 = init_params(kp)

    # Pad / cast the parameters once (outside the per-call path).
    w1p, b1p, w2p, b2p = prepare_params(w1, b1, w2, b2)

    use_bf16_epi = _bf16_eup_available()   # bf16 epilogue only where the EUP has bf16
    out = decoder_forward(x, w1p, b1p, w2p, b2p, bf16_epilogue=use_bf16_epi)
    out = jax.block_until_ready(out)

    ref = reference_forward(x, w1, b1, w2, b2)  # f32 reference
    assert out.shape == (B, OUT_DIM), out.shape
    # bf16 matmuls / bf16 output -> relaxed tolerance vs the f32 reference.
    assert jnp.allclose(out.astype(jnp.float32), ref, atol=2e-2, rtol=2e-2), (
        "mismatch vs JAX reference"
    )

    print("KERNEL_OK")
</pallas_src>

<mosaic_0001>
module attributes {stable_mosaic.version = 11 : i64} {
  func.func @decoder_kernel(%arg0: i32, %arg1: memref<16x20xf32, #tpu.memory_space<vmem>>, %arg2: memref<20x512xbf16, #tpu.memory_space<vmem>>, %arg3: memref<1x512xf32, #tpu.memory_space<vmem>>, %arg4: memref<512x784xbf16, #tpu.memory_space<vmem>>, %arg5: memref<1x784xf32, #tpu.memory_space<vmem>>, %arg6: memref<16x784xbf16, #tpu.memory_space<vmem>>) attributes {dimension_semantics = [#tpu.dimension_semantics<parallel>], iteration_bounds = array<i64: 1>, scalar_prefetch = 0 : i64, scratch_operands = 0 : i64, tpu.core_type = #tpu.core_type<tc>, window_params = [{transform_indices = @transform_0, window_bounds = array<i64: 16, 20>}, {pipeline_mode = #tpu.pipeline_mode<synchronous>, transform_indices = @transform_1, window_bounds = array<i64: 20, 512>}, {pipeline_mode = #tpu.pipeline_mode<synchronous>, transform_indices = @transform_2, window_bounds = array<i64: 1, 512>}, {pipeline_mode = #tpu.pipeline_mode<synchronous>, transform_indices = @transform_3, window_bounds = array<i64: 512, 784>}, {pipeline_mode = #tpu.pipeline_mode<synchronous>, transform_indices = @transform_4, window_bounds = array<i64: 1, 784>}, {transform_indices = @transform_5, window_bounds = array<i64: 16, 784>}]} {
    %c0 = arith.constant 0 : index
    %c0_0 = arith.constant 0 : index
    %0 = vector.load %arg1[%c0, %c0_0] : memref<16x20xf32, #tpu.memory_space<vmem>>, vector<16x20xf32>
    %1 = arith.truncf %0 : vector<16x20xf32> to vector<16x20xbf16>
    %c0_1 = arith.constant 0 : index
    %c0_2 = arith.constant 0 : index
    %2 = vector.load %arg2[%c0_1, %c0_2] : memref<20x512xbf16, #tpu.memory_space<vmem>>, vector<20x512xbf16>
    %cst = arith.constant dense<0.000000e+00> : vector<16x512xf32>
    %3 = tpu.matmul %1, %2, %cst {dimension_numbers = #tpu.dot_dimension_numbers<[1], [0], [0], [1], [0, 0, 1, 1], [], []>} : vector<16x20xbf16>, vector<20x512xbf16>, vector<16x512xf32> -> vector<16x512xf32>
    %c0_3 = arith.constant 0 : index
    %c0_4 = arith.constant 0 : index
    %4 = vector.load %arg3[%c0_3, %c0_4] : memref<1x512xf32, #tpu.memory_space<vmem>>, vector<1x512xf32>
    %5 = vector.broadcast %4 : vector<1x512xf32> to vector<16x512xf32>
    %6 = arith.addf %3, %5 : vector<16x512xf32>
    %cst_5 = arith.constant 0.000000e+00 : f32
    %7 = vector.broadcast %cst_5 : f32 to vector<16x512xf32>
    %8 = arith.maximumf %6, %7 : vector<16x512xf32>
    %9 = arith.truncf %8 : vector<16x512xf32> to vector<16x512xbf16>
    %c0_6 = arith.constant 0 : index
    %c0_7 = arith.constant 0 : index
    %10 = vector.load %arg4[%c0_6, %c0_7] : memref<512x784xbf16, #tpu.memory_space<vmem>>, vector<512x784xbf16>
    %cst_8 = arith.constant dense<0.000000e+00> : vector<16x784xf32>
    %11 = tpu.matmul %9, %10, %cst_8 {dimension_numbers = #tpu.dot_dimension_numbers<[1], [0], [0], [1], [0, 0, 1, 1], [], []>} : vector<16x512xbf16>, vector<512x784xbf16>, vector<16x784xf32> -> vector<16x784xf32>
    %c0_9 = arith.constant 0 : index
    %c0_10 = arith.constant 0 : index
    %12 = vector.load %arg5[%c0_9, %c0_10] : memref<1x784xf32, #tpu.memory_space<vmem>>, vector<1x784xf32>
    %13 = vector.broadcast %12 : vector<1x784xf32> to vector<16x784xf32>
    %14 = arith.addf %11, %13 : vector<16x784xf32>
    %cst_11 = arith.constant 5.000000e-01 : f32
    %15 = vector.broadcast %cst_11 : f32 to vector<16x784xf32>
    %16 = arith.mulf %15, %14 : vector<16x784xf32>
    %17 = math.tanh %16 : vector<16x784xf32>
    %cst_12 = arith.constant 5.000000e-01 : f32
    %18 = vector.broadcast %cst_12 : f32 to vector<16x784xf32>
    %19 = arith.mulf %18, %17 : vector<16x784xf32>
    %cst_13 = arith.constant 5.000000e-01 : f32
    %20 = vector.broadcast %cst_13 : f32 to vector<16x784xf32>
    %21 = arith.addf %19, %20 : vector<16x784xf32>
    %22 = arith.truncf %21 : vector<16x784xf32> to vector<16x784xbf16>
    %c0_14 = arith.constant 0 : index
    %c0_15 = arith.constant 0 : index
    %23 = vector.load %arg6[%c0_14, %c0_15] : memref<16x784xbf16, #tpu.memory_space<vmem>>, vector<16x784xbf16>
    tpu.vector_store %arg6[%c0_14, %c0_15], %22 {strides = array<i32>} : memref<16x784xbf16, #tpu.memory_space<vmem>>, vector<16x784xbf16>,
    return
  }
  func.func @transform_0(%arg0: i32) -> (i32, i32) {
    %c0_i32 = arith.constant 0 : i32
    %c0_i32_0 = arith.constant 0 : i32
    return %arg0, %c0_i32 : i32, i32
  }
  func.func @transform_1(%arg0: i32) -> (i32, i32) {
    %c0_i32 = arith.constant 0 : i32
    %c0_i32_0 = arith.constant 0 : i32
    %c0_i32_1 = arith.constant 0 : i32
    return %c0_i32, %c0_i32_0 : i32, i32
  }
  func.func @transform_2(%arg0: i32) -> (i32, i32) {
    %c0_i32 = arith.constant 0 : i32
    %c0_i32_0 = arith.constant 0 : i32
    %c0_i32_1 = arith.constant 0 : i32
    return %c0_i32, %c0_i32_0 : i32, i32
  }
  func.func @transform_3(%arg0: i32) -> (i32, i32) {
    %c0_i32 = arith.constant 0 : i32
    %c0_i32_0 = arith.constant 0 : i32
    %c0_i32_1 = arith.constant 0 : i32
    return %c0_i32, %c0_i32_0 : i32, i32
  }
  func.func @transform_4(%arg0: i32) -> (i32, i32) {
    %c0_i32 = arith.constant 0 : i32
    %c0_i32_0 = arith.constant 0 : i32
    %c0_i32_1 = arith.constant 0 : i32
    return %c0_i32, %c0_i32_0 : i32, i32
  }
  func.func @transform_5(%arg0: i32) -> (i32, i32) {
    %c0_i32 = arith.constant 0 : i32
    %c0_i32_0 = arith.constant 0 : i32
    return %arg0, %c0_i32 : i32, i32
  }
}

</mosaic_0001>

<llo_original>
// kernel: decoder_forward.1
$region0: #{decoder_forward.1}
  #allocation0 [shape = 'u32[]', space=smem, size = 0x4, offset = 0x4, fixed_abs, tag = 'smem constant byte address 0x4 - core index']
  #allocation1 [shape = 'u32[144,128]{1,0:T(1,128)}', space=vmem, size = 0x12000, scoped, tag = 'internal scratch']
  %s0 = inlined_call_operand.vmem [shape: f32[16,20], index: 0, kind: input, shape index: {}]
  %s1 = inlined_call_operand.vmem [shape: bf16[20,512], index: 1, kind: input, shape index: {}]
  %s2 = inlined_call_operand.vmem [shape: f32[1,512], index: 2, kind: input, shape index: {}]
  %s3 = inlined_call_operand.vmem [shape: bf16[512,784], index: 3, kind: input, shape index: {}]
  %s4 = inlined_call_operand.vmem [shape: f32[1,784], index: 4, kind: input, shape index: {}]
  %s5 = inlined_call_operand.vmem [shape: bf16[16,784], index: 5, kind: output, shape index: {}]
  %s6 = sld [smem:[#allocation0]]
  $region30: #{decoder_forward.1} parent=0
    _
  %s8 = ssub.s32 1, %s6
  %s9 = scalar_select 0, %s8, %s6
  // Predicated region
  $region2: #{decoder_forward.1} parent=0 // pred_check
    _
  $region3: #{decoder_forward.1} parent=0 // pred_check_branch
    %11 = sbr.rel (0) target = $region5
  $region4: #{decoder_forward.1} parent=0 // pred_region
    _
  $region5: #{decoder_forward.1} parent=0 // pred_fallthru
    _
  // Predicated region
  $region6: #{decoder_forward.1} parent=0 // pred_check
    _
  $region7: #{decoder_forward.1} parent=0 // pred_check_branch
    %13 = sbr.rel (0) target = $region9
  $region8: #{decoder_forward.1} parent=0 // pred_region
    _
  $region9: #{decoder_forward.1} parent=0 // pred_fallthru
    _
  // Predicated region
  $region10: #{decoder_forward.1} parent=0 // pred_check
    _
  $region11: #{decoder_forward.1} parent=0 // pred_check_branch
    %15 = sbr.rel (0) target = $region13
  $region12: #{decoder_forward.1} parent=0 // pred_region
    _
  $region13: #{decoder_forward.1} parent=0 // pred_fallthru
    _
  // Predicated region
  $region14: #{decoder_forward.1} parent=0 // pred_check
    _
  $region15: #{decoder_forward.1} parent=0 // pred_check_branch
    %17 = sbr.rel (0) target = $region17
  $region16: #{decoder_forward.1} parent=0 // pred_region
    _
  $region17: #{decoder_forward.1} parent=0 // pred_fallthru
    _
  // Predicated region
  $region18: #{decoder_forward.1} parent=0 // pred_check
    _
  $region19: #{decoder_forward.1} parent=0 // pred_check_branch
    %19 = sbr.rel (0) target = $region21
  $region20: #{decoder_forward.1} parent=0 // pred_region
    _
  $region21: #{decoder_forward.1} parent=0 // pred_fallthru
    _
  %v21 = vld [vmem:[%s0] sm:$0xff]
  %v22 = vld [vmem:[%s0 + $0x8] sm:$0xff]
  %v23 = vpack.c.bf16 %v22, %v21
  %v24 = vld [vmem:[%s1] sm:$0xff]
  %v25 = vld [vmem:[%s1 + $0x8] sm:$0xff]
  %v26 = vld [vmem:[%s1 + $0x10] sm:$0xff]
  %v27 = vld [vmem:[%s1 + $0x18] sm:$0xff]
  %v28 = vld [vmem:[%s1 + $0x20] sm:$0x33]
  %v29 = vld [vmem:[%s1 + $0x28] sm:$0x33]
  %v30 = vld [vmem:[%s2] sm:$0xf]
  %v32 = vlaneseq
  %v33 = vshrl.u32 %v32, 7
  %v34 = vsub.s32 0, %v33
  %v35 = vrot.slane %v30, %v34
  %v36 = vlaneseq
  %v37 = vshrl.u32 %v36, 7
  %v38 = vsub.s32 1, %v37
  %v39 = vrot.slane %v30, %v38
  %v40 = vlaneseq
  %v41 = vshrl.u32 %v40, 7
  %v42 = vsub.s32 2, %v41
  %v43 = vrot.slane %v30, %v42
  %v44 = vlaneseq
  %v45 = vshrl.u32 %v44, 7
  %v46 = vsub.s32 3, %v45
  %v47 = vrot.slane %v30, %v46
  %v58 = vunpack.c.l.b16 %v24
  %v59 = vunpack.c.h.b16 %v24
  %v60 = vunpack.c.l.b16 %v25
  %v61 = vunpack.c.h.b16 %v25
  %v62 = vunpack.c.l.b16 %v26
  %v63 = vunpack.c.h.b16 %v26
  %v64 = vunpack.c.l.b16 %v27
  %v65 = vunpack.c.h.b16 %v27
  %v66 = vunpack.c.l.b16 %v28
  %v67 = vunpack.c.h.b16 %v28
  %v68 = vunpack.c.l.b16 %v29
  %v69 = vunpack.c.h.b16 %v29
  %v70 = vpack.c.b16 %v62, %v58
  %v71 = vpack.c.b16 %v63, %v59
  %v72 = vpack.c.b16 %v64, %v60
  %v73 = vpack.c.b16 %v65, %v61
  %v74 = vpack.c.b16 %v66, %v66
  %v75 = vpack.c.b16 %v67, %v67
  %v76 = vpack.c.b16 %v68, %v68
  %v77 = vpack.c.b16 %v69, %v69
  %vm82 = vcmask 162816
  %v84 = vsel %vm82, %v23, 0
  %vm86 = vcmask 1041408
  %v88 = vsel %vm86, %v74, 0
  %v91 = vsel %vm86, %v75, 0
  %v94 = vsel %vm86, %v76, 0
  %v97 = vsel %vm86, %v77, 0
  %99 = vmatprep.subr.bf16.mxu0 0
  %100 = vmatpush1.bf16.msra.mxu0 0
  %101 = vmatprep.subr.bf16.mxu0 0
  %102 = vmatpush1.bf16.msra.mxu0 0
  %103 = vmatprep.subr.bf16.mxu0 0
  %104 = vmatpush1.bf16.msra.mxu0 0
  %105 = vmatprep.subr.bf16.mxu0 0
  %106 = vmatpush1.bf16.msra.mxu0 0
  %107 = vmatprep.subr.bf16.mxu0 0
  %108 = vmatpush1.bf16.msra.mxu0 0
  %109 = vmatprep.subr.bf16.mxu0 0
  %110 = vmatpush1.bf16.msra.mxu0 0
  %111 = vmatprep.subr.bf16.mxu0 %v91
  %112 = vmatpush1.bf16.msra.mxu0 %v88
  %113 = vmatprep.subr.bf16.mxu0 %v71
  %114 = vmatpush1.bf16.msra.mxu0 %v70
  %115 = vmatprep.subr.bf16.mxu0 0
  %116 = vmatpush2.bf16.msra.mxu0 0
  %117 = vmatprep.subr.bf16.mxu0 0
  %118 = vmatpush2.bf16.msra.mxu0 0
  %119 = vmatprep.subr.bf16.mxu0 0
  %120 = vmatpush2.bf16.msra.mxu0 0
  %121 = vmatprep.subr.bf16.mxu0 0
  %122 = vmatpush2.bf16.msra.mxu0 0
  %123 = vmatprep.subr.bf16.mxu0 0
  %124 = vmatpush2.bf16.msra.mxu0 0
  %125 = vmatprep.subr.bf16.mxu0 0
  %126 = vmatpush2.bf16.msra.mxu0 0
  %127 = vmatprep.subr.bf16.mxu0 0
  %128 = vmatpush2.bf16.msra.mxu0 0
  %129 = vmatprep.subr.bf16.mxu0 0
  %130 = vmatpush2.bf16.msra.mxu0 0
  %131 = vmatprep.mubr.bf16.mxu0 0
  %132 = vmatmul.mubr.bf16.gmra.mxu0 %v84
  %v133 = vpop.f32.mrf.mxu0
  %v134 = vadd.f32 %v35, %v133
  %v135 = vpop.f32.mrf.mxu0
  %v136 = vadd.f32 %v39, %v135
  %v137 = vpop.f32.mrf.mxu0
  %v138 = vadd.f32 %v35, %v137
  %v139 = vpop.f32.mrf.mxu0
  %v140 = vadd.f32 %v39, %v139
  %141 = vdwg.mxu0
  %142 = vmatprep.subr.bf16.mxu0 0
  %143 = vmatpush1.bf16.msra.mxu0 0
  %144 = vmatprep.subr.bf16.mxu0 0
  %145 = vmatpush1.bf16.msra.mxu0 0
  %146 = vmatprep.subr.bf16.mxu0 0
  %147 = vmatpush1.bf16.msra.mxu0 0
  %148 = vmatprep.subr.bf16.mxu0 0
  %149 = vmatpush1.bf16.msra.mxu0 0
  %150 = vmatprep.subr.bf16.mxu0 0
  %151 = vmatpush1.bf16.msra.mxu0 0
  %152 = vmatprep.subr.bf16.mxu0 0
  %153 = vmatpush1.bf16.msra.mxu0 0
  %154 = vmatprep.subr.bf16.mxu0 %v97
  %155 = vmatpush1.bf16.msra.mxu0 %v94
  %156 = vmatprep.subr.bf16.mxu0 %v73
  %157 = vmatpush1.bf16.msra.mxu0 %v72
  %158 = vmatprep.subr.bf16.mxu0 0
  %159 = vmatpush2.bf16.msra.mxu0 0
  %160 = vmatprep.subr.bf16.mxu0 0
  %161 = vmatpush2.bf16.msra.mxu0 0
  %162 = vmatprep.subr.bf16.mxu0 0
  %163 = vmatpush2.bf16.msra.mxu0 0
  %164 = vmatprep.subr.bf16.mxu0 0
  %165 = vmatpush2.bf16.msra.mxu0 0
  %166 = vmatprep.subr.bf16.mxu0 0
  %167 = vmatpush2.bf16.msra.mxu0 0
  %168 = vmatprep.subr.bf16.mxu0 0
  %169 = vmatpush2.bf16.msra.mxu0 0
  %170 = vmatprep.subr.bf16.mxu0 0
  %171 = vmatpush2.bf16.msra.mxu0 0
  %172 = vmatprep.subr.bf16.mxu0 0
  %173 = vmatpush2.bf16.msra.mxu0 0
  %174 = vmatprep.mubr.bf16.mxu0 0
  %175 = vmatmul.mubr.bf16.gmra.mxu0 %v84
  %v176 = vpop.f32.mrf.mxu0
  %v177 = vadd.f32 %v43, %v176
  %v178 = vpop.f32.mrf.mxu0
  %v179 = vadd.f32 %v47, %v178
  %v180 = vpop.f32.mrf.mxu0
  %v181 = vadd.f32 %v43, %v180
  %v182 = vpop.f32.mrf.mxu0
  %v183 = vadd.f32 %v47, %v182
  %184 = vdwg.mxu0
  %v185 = vmax.f32 %v134, 0.0
  %v186 = vmax.f32 %v136, 0.0
  %v187 = vmax.f32 %v177, 0.0
  %v188 = vmax.f32 %v179, 0.0
  %v189 = vmax.f32 %v138, 0.0
  %v190 = vmax.f32 %v140, 0.0
  %v191 = vmax.f32 %v181, 0.0
  %v192 = vmax.f32 %v183, 0.0
  %v193 = vpack.c.bf16 %v189, %v185
  %v194 = vpack.c.bf16 %v190, %v186
  %v195 = vpack.c.bf16 %v191, %v187
  %v196 = vpack.c.bf16 %v192, %v188
  %v197 = vld [vmem:[%s3] sm:$0xff]
  %v198 = vld [vmem:[%s3 + $0x8] sm:$0xff]
  %v199 = vld [vmem:[%s3 + $0x10] sm:$0xff]
  %v200 = vld [vmem:[%s3 + $0x18] sm:$0xf]
  %v201 = vld [vmem:[%s3 + $0x1c] sm:$0xff]
  %v202 = vld [vmem:[%s3 + $0x24] sm:$0xff]
  %v203 = vld [vmem:[%s3 + $0x2c] sm:$0xff]
  %v204 = vld [vmem:[%s3 + $0x34] sm:$0xf]
  %v205 = vld [vmem:[%s3 + $0x38] sm:$0xff]
  %v206 = vld [vmem:[%s3 + $0x40] sm:$0xff]
  %v207 = vld [vmem:[%s3 + $0x48] sm:$0xff]
  %v208 = vld [vmem:[%s3 + $0x50] sm:$0xf]
  %v209 = vld [vmem:[%s3 + $0x54] sm:$0xff]
  %v210 = vld [vmem:[%s3 + $0x5c] sm:$0xff]
  %v211 = vld [vmem:[%s3 + $0x64] sm:$0xff]
  %v212 = vld [vmem:[%s3 + $0x6c] sm:$0xf]
  %v213 = vld [vmem:[%s3 + $0x70] sm:$0xff]
  %v214 = vld [vmem:[%s3 + $0x78] sm:$0xff]
  %v215 = vld [vmem:[%s3 + $0x80] sm:$0xff]
  %v216 = vld [vmem:[%s3 + $0x88] sm:$0xf]
  %v217 = vld [vmem:[%s3 + $0x8c] sm:$0xff]
  %v218 = vld [vmem:[%s3 + $0x94] sm:$0xff]
  %v219 = vld [vmem:[%s3 + $0x9c] sm:$0xff]
  %v220 = vld [vmem:[%s3 + $0xa4] sm:$0xf]
  %v221 = vld [vmem:[%s3 + $0xa8] sm:$0xff]
  %v222 = vld [vmem:[%s3 + $0xb0] sm:$0xff]
  %v223 = vld [vmem:[%s3 + $0xb8] sm:$0xff]
  %v224 = vld [vmem:[%s3 + $0xc0] sm:$0xf]
  %v225 = vld [vmem:[%s3 + $0xc4] sm:$0xff]
  %v226 = vld [vmem:[%s3 + $0xcc] sm:$0xff]
  %v227 = vld [vmem:[%s3 + $0xd4] sm:$0xff]
  %v228 = vld [vmem:[%s3 + $0xdc] sm:$0xf]
  %v229 = vld [vmem:[%s3 + $0xe0] sm:$0xff]
  %v230 = vld [vmem:[%s3 + $0xe8] sm:$0xff]
  %v231 = vld [vmem:[%s3 + $0xf0] sm:$0xff]
  %v232 = vld [vmem:[%s3 + $0xf8] sm:$0xf]
  %v233 = vld [vmem:[%s3 + $0xfc] sm:$0xff]
  %v234 = vld [vmem:[%s3 + $0x104] sm:$0xff]
  %v235 = vld [vmem:[%s3 + $0x10c] sm:$0xff]
  %v236 = vld [vmem:[%s3 + $0x114] sm:$0xf]
  %v237 = vld [vmem:[%s3 + $0x118] sm:$0xff]
  %v238 = vld [vmem:[%s3 + $0x120] sm:$0xff]
  %v239 = vld [vmem:[%s3 + $0x128] sm:$0xff]
  %v240 = vld [vmem:[%s3 + $0x130] sm:$0xf]
  %v241 = vld [vmem:[%s3 + $0x134] sm:$0xff]
  %v242 = vld [vmem:[%s3 + $0x13c] sm:$0xff]
  %v243 = vld [vmem:[%s3 + $0x144] sm:$0xff]
  %v244 = vld [vmem:[%s3 + $0x14c] sm:$0xf]
  %v245 = vld [vmem:[%s3 + $0x150] sm:$0xff]
  %v246 = vld [vmem:[%s3 + $0x158] sm:$0xff]
  %v247 = vld [vmem:[%s3 + $0x160] sm:$0xff]
  %v248 = vld [vmem:[%s3 + $0x168] sm:$0xf]
  %v249 = vld [vmem:[%s3 + $0x16c] sm:$0xff]
  %v250 = vld [vmem:[%s3 + $0x174] sm:$0xff]
  %v251 = vld [vmem:[%s3 + $0x17c] sm:$0xff]
  %v252 = vld [vmem:[%s3 + $0x184] sm:$0xf]
  %v253 = vld [vmem:[%s3 + $0x188] sm:$0xff]
  %v254 = vld [vmem:[%s3 + $0x190] sm:$0xff]
  %v255 = vld [vmem:[%s3 + $0x198] sm:$0xff]
  %v256 = vld [vmem:[%s3 + $0x1a0] sm:$0xf]
  %v257 = vld [vmem:[%s3 + $0x1a4] sm:$0xff]
  %v258 = vld [vmem:[%s3 + $0x1ac] sm:$0xff]
  %v259 = vld [vmem:[%s3 + $0x1b4] sm:$0xff]
  %v260 = vld [vmem:[%s3 + $0x1bc] sm:$0xf]
  %v261 = vld [vmem:[%s3 + $0x1c0] sm:$0xff]
  %v262 = vld [vmem:[%s3 + $0x1c8] sm:$0xff]
  %v263 = vld [vmem:[%s3 + $0x1d0] sm:$0xff]
  %v264 = vld [vmem:[%s3 + $0x1d8] sm:$0xf]
  %v265 = vld [vmem:[%s3 + $0x1dc] sm:$0xff]
  %v266 = vld [vmem:[%s3 + $0x1e4] sm:$0xff]
  %v267 = vld [vmem:[%s3 + $0x1ec] sm:$0xff]
  %v268 = vld [vmem:[%s3 + $0x1f4] sm:$0xf]
  %v269 = vld [vmem:[%s3 + $0x1f8] sm:$0xff]
  %v270 = vld [vmem:[%s3 + $0x200] sm:$0xff]
  %v271 = vld [vmem:[%s3 + $0x208] sm:$0xff]
  %v272 = vld [vmem:[%s3 + $0x210] sm:$0xf]
  %v273 = vld [vmem:[%s3 + $0x214] sm:$0xff]
  %v274 = vld [vmem:[%s3 + $0x21c] sm:$0xff]
  %v275 = vld [vmem:[%s3 + $0x224] sm:$0xff]
  %v276 = vld [vmem:[%s3 + $0x22c] sm:$0xf]
  %v277 = vld [vmem:[%s3 + $0x230] sm:$0xff]
  %v278 = vld [vmem:[%s3 + $0x238] sm:$0xff]
  %v279 = vld [vmem:[%s3 + $0x240] sm:$0xff]
  %v280 = vld [vmem:[%s3 + $0x248] sm:$0xf]
  %v281 = vld [vmem:[%s3 + $0x24c] sm:$0xff]
  %v282 = vld [vmem:[%s3 + $0x254] sm:$0xff]
  %v283 = vld [vmem:[%s3 + $0x25c] sm:$0xff]
  %v284 = vld [vmem:[%s3 + $0x264] sm:$0xf]
  %v285 = vld [vmem:[%s3 + $0x268] sm:$0xff]
  %v286 = vld [vmem:[%s3 + $0x270] sm:$0xff]
  %v287 = vld [vmem:[%s3 + $0x278] sm:$0xff]
  %v288 = vld [vmem:[%s3 + $0x280] sm:$0xf]
  %v289 = vld [vmem:[%s3 + $0x284] sm:$0xff]
  %v290 = vld [vmem:[%s3 + $0x28c] sm:$0xff]
  %v291 = vld [vmem:[%s3 + $0x294] sm:$0xff]
  %v292 = vld [vmem:[%s3 + $0x29c] sm:$0xf]
  %v293 = vld [vmem:[%s3 + $0x2a0] sm:$0xff]
  %v294 = vld [vmem:[%s3 + $0x2a8] sm:$0xff]
  %v295 = vld [vmem:[%s3 + $0x2b0] sm:$0xff]
  %v296 = vld [vmem:[%s3 + $0x2b8] sm:$0xf]
  %v297 = vld [vmem:[%s3 + $0x2bc] sm:$0xff]
  %v298 = vld [vmem:[%s3 + $0x2c4] sm:$0xff]
  %v299 = vld [vmem:[%s3 + $0x2cc] sm:$0xff]
  %v300 = vld [vmem:[%s3 + $0x2d4] sm:$0xf]
  %v301 = vld [vmem:[%s3 + $0x2d8] sm:$0xff]
  %v302 = vld [vmem:[%s3 + $0x2e0] sm:$0xff]
  %v303 = vld [vmem:[%s3 + $0x2e8] sm:$0xff]
  %v304 = vld [vmem:[%s3 + $0x2f0] sm:$0xf]
  %v305 = vld [vmem:[%s3 + $0x2f4] sm:$0xff]
  %v306 = vld [vmem:[%s3 + $0x2fc] sm:$0xff]
  %v307 = vld [vmem:[%s3 + $0x304] sm:$0xff]
  %v308 = vld [vmem:[%s3 + $0x30c] sm:$0xf]
  %v309 = vld [vmem:[%s3 + $0x310] sm:$0xff]
  %v310 = vld [vmem:[%s3 + $0x318] sm:$0xff]
  %v311 = vld [vmem:[%s3 + $0x320] sm:$0xff]
  %v312 = vld [vmem:[%s3 + $0x328] sm:$0xf]
  %v313 = vld [vmem:[%s3 + $0x32c] sm:$0xff]
  %v314 = vld [vmem:[%s3 + $0x334] sm:$0xff]
  %v315 = vld [vmem:[%s3 + $0x33c] sm:$0xff]
  %v316 = vld [vmem:[%s3 + $0x344] sm:$0xf]
  %v317 = vld [vmem:[%s3 + $0x348] sm:$0xff]
  %v318 = vld [vmem:[%s3 + $0x350] sm:$0xff]
  %v319 = vld [vmem:[%s3 + $0x358] sm:$0xff]
  %v320 = vld [vmem:[%s3 + $0x360] sm:$0xf]
  %v321 = vld [vmem:[%s3 + $0x364] sm:$0xff]
  %v322 = vld [vmem:[%s3 + $0x36c] sm:$0xff]
  %v323 = vld [vmem:[%s3 + $0x374] sm:$0xff]
  %v324 = vld [vmem:[%s3 + $0x37c] sm:$0xf]
  %v325 = vld [vmem:[%s3 + $0x380] sm:$0xff]
  %v326 = vld [vmem:[%s3 + $0x388] sm:$0xff]
  %v327 = vld [vmem:[%s3 + $0x390] sm:$0xff]
  %v328 = vld [vmem:[%s3 + $0x398] sm:$0xf]
  %v329 = vld [vmem:[%s3 + $0x39c] sm:$0xff]
  %v330 = vld [vmem:[%s3 + $0x3a4] sm:$0xff]
  %v331 = vld [vmem:[%s3 + $0x3ac] sm:$0xff]
  %v332 = vld [vmem:[%s3 + $0x3b4] sm:$0xf]
  %v333 = vld [vmem:[%s3 + $0x3b8] sm:$0xff]
  %v334 = vld [vmem:[%s3 + $0x3c0] sm:$0xff]
  %v335 = vld [vmem:[%s3 + $0x3c8] sm:$0xff]
  %v336 = vld [vmem:[%s3 + $0x3d0] sm:$0xf]
  %v337 = vld [vmem:[%s3 + $0x3d4] sm:$0xff]
  %v338 = vld [vmem:[%s3 + $0x3dc] sm:$0xff]
  %v339 = vld [vmem:[%s3 + $0x3e4] sm:$0xff]
  %v340 = vld [vmem:[%s3 + $0x3ec] sm:$0xf]
  %v341 = vld [vmem:[%s3 + $0x3f0] sm:$0xff]
  %v342 = vld [vmem:[%s3 + $0x3f8] sm:$0xff]
  %v343 = vld [vmem:[%s3 + $0x400] sm:$0xff]
  %v344 = vld [vmem:[%s3 + $0x408] sm:$0xf]
  %v345 = vld [vmem:[%s3 + $0x40c] sm:$0xff]
  %v346 = vld [vmem:[%s3 + $0x414] sm:$0xff]
  %v347 = vld [vmem:[%s3 + $0x41c] sm:$0xff]
  %v348 = vld [vmem:[%s3 + $0x424] sm:$0xf]
  %v349 = vld [vmem:[%s3 + $0x428] sm:$0xff]
  %v350 = vld [vmem:[%s3 + $0x430] sm:$0xff]
  %v351 = vld [vmem:[%s3 + $0x438] sm:$0xff]
  %v352 = vld [vmem:[%s3 + $0x440] sm:$0xf]
  %v353 = vld [vmem:[%s3 + $0x444] sm:$0xff]
  %v354 = vld [vmem:[%s3 + $0x44c] sm:$0xff]
  %v355 = vld [vmem:[%s3 + $0x454] sm:$0xff]
  %v356 = vld [vmem:[%s3 + $0x45c] sm:$0xf]
  %v357 = vld [vmem:[%s3 + $0x460] sm:$0xff]
  %v358 = vld [vmem:[%s3 + $0x468] sm:$0xff]
  %v359 = vld [vmem:[%s3 + $0x470] sm:$0xff]
  %v360 = vld [vmem:[%s3 + $0x478] sm:$0xf]
  %v361 = vld [vmem:[%s3 + $0x47c] sm:$0xff]
  %v362 = vld [vmem:[%s3 + $0x484] sm:$0xff]
  %v363 = vld [vmem:[%s3 + $0x48c] sm:$0xff]
  %v364 = vld [vmem:[%s3 + $0x494] sm:$0xf]
  %v365 = vld [vmem:[%s3 + $0x498] sm:$0xff]
  %v366 = vld [vmem:[%s3 + $0x4a0] sm:$0xff]
  %v367 = vld [vmem:[%s3 + $0x4a8] sm:$0xff]
  %v368 = vld [vmem:[%s3 + $0x4b0] sm:$0xf]
  %v369 = vld [vmem:[%s3 + $0x4b4] sm:$0xff]
  %v370 = vld [vmem:[%s3 + $0x4bc] sm:$0xff]
  %v371 = vld [vmem:[%s3 + $0x4c4] sm:$0xff]
  %v372 = vld [vmem:[%s3 + $0x4cc] sm:$0xf]
  %v373 = vld [vmem:[%s3 + $0x4d0] sm:$0xff]
  %v374 = vld [vmem:[%s3 + $0x4d8] sm:$0xff]
  %v375 = vld [vmem:[%s3 + $0x4e0] sm:$0xff]
  %v376 = vld [vmem:[%s3 + $0x4e8] sm:$0xf]
  %v377 = vld [vmem:[%s3 + $0x4ec] sm:$0xff]
  %v378 = vld [vmem:[%s3 + $0x4f4] sm:$0xff]
  %v379 = vld [vmem:[%s3 + $0x4fc] sm:$0xff]
  %v380 = vld [vmem:[%s3 + $0x504] sm:$0xf]
  %v381 = vld [vmem:[%s3 + $0x508] sm:$0xff]
  %v382 = vld [vmem:[%s3 + $0x510] sm:$0xff]
  %v383 = vld [vmem:[%s3 + $0x518] sm:$0xff]
  %v384 = vld [vmem:[%s3 + $0x520] sm:$0xf]
  %v385 = vld [vmem:[%s3 + $0x524] sm:$0xff]
  %v386 = vld [vmem:[%s3 + $0x52c] sm:$0xff]
  %v387 = vld [vmem:[%s3 + $0x534] sm:$0xff]
  %v388 = vld [vmem:[%s3 + $0x53c] sm:$0xf]
  %v389 = vld [vmem:[%s3 + $0x540] sm:$0xff]
  %v390 = vld [vmem:[%s3 + $0x548] sm:$0xff]
  %v391 = vld [vmem:[%s3 + $0x550] sm:$0xff]
  %v392 = vld [vmem:[%s3 + $0x558] sm:$0xf]
  %v393 = vld [vmem:[%s3 + $0x55c] sm:$0xff]
  %v394 = vld [vmem:[%s3 + $0x564] sm:$0xff]
  %v395 = vld [vmem:[%s3 + $0x56c] sm:$0xff]
  %v396 = vld [vmem:[%s3 + $0x574] sm:$0xf]
  %v397 = vld [vmem:[%s3 + $0x578] sm:$0xff]
  %v398 = vld [vmem:[%s3 + $0x580] sm:$0xff]
  %v399 = vld [vmem:[%s3 + $0x588] sm:$0xff]
  %v400 = vld [vmem:[%s3 + $0x590] sm:$0xf]
  %v401 = vld [vmem:[%s3 + $0x594] sm:$0xff]
  %v402 = vld [vmem:[%s3 + $0x59c] sm:$0xff]
  %v403 = vld [vmem:[%s3 + $0x5a4] sm:$0xff]
  %v404 = vld [vmem:[%s3 + $0x5ac] sm:$0xf]
  %v405 = vld [vmem:[%s3 + $0x5b0] sm:$0xff]
  %v406 = vld [vmem:[%s3 + $0x5b8] sm:$0xff]
  %v407 = vld [vmem:[%s3 + $0x5c0] sm:$0xff]
  %v408 = vld [vmem:[%s3 + $0x5c8] sm:$0xf]
  %v409 = vld [vmem:[%s3 + $0x5cc] sm:$0xff]
  %v410 = vld [vmem:[%s3 + $0x5d4] sm:$0xff]
  %v411 = vld [vmem:[%s3 + $0x5dc] sm:$0xff]
  %v412 = vld [vmem:[%s3 + $0x5e4] sm:$0xf]
  %v413 = vld [vmem:[%s3 + $0x5e8] sm:$0xff]
  %v414 = vld [vmem:[%s3 + $0x5f0] sm:$0xff]
  %v415 = vld [vmem:[%s3 + $0x5f8] sm:$0xff]
  %v416 = vld [vmem:[%s3 + $0x600] sm:$0xf]
  %v417 = vld [vmem:[%s3 + $0x604] sm:$0xff]
  %v418 = vld [vmem:[%s3 + $0x60c] sm:$0xff]
  %v419 = vld [vmem:[%s3 + $0x614] sm:$0xff]
  %v420 = vld [vmem:[%s3 + $0x61c] sm:$0xf]
  %v421 = vld [vmem:[%s3 + $0x620] sm:$0xff]
  %v422 = vld [vmem:[%s3 + $0x628] sm:$0xff]
  %v423 = vld [vmem:[%s3 + $0x630] sm:$0xff]
  %v424 = vld [vmem:[%s3 + $0x638] sm:$0xf]
  %v425 = vld [vmem:[%s3 + $0x63c] sm:$0xff]
  %v426 = vld [vmem:[%s3 + $0x644] sm:$0xff]
  %v427 = vld [vmem:[%s3 + $0x64c] sm:$0xff]
  %v428 = vld [vmem:[%s3 + $0x654] sm:$0xf]
  %v429 = vld [vmem:[%s3 + $0x658] sm:$0xff]
  %v430 = vld [vmem:[%s3 + $0x660] sm:$0xff]
  %v431 = vld [vmem:[%s3 + $0x668] sm:$0xff]
  %v432 = vld [vmem:[%s3 + $0x670] sm:$0xf]
  %v433 = vld [vmem:[%s3 + $0x674] sm:$0xff]
  %v434 = vld [vmem:[%s3 + $0x67c] sm:$0xff]
  %v435 = vld [vmem:[%s3 + $0x684] sm:$0xff]
  %v436 = vld [vmem:[%s3 + $0x68c] sm:$0xf]
  %v437 = vld [vmem:[%s3 + $0x690] sm:$0xff]
  %v438 = vld [vmem:[%s3 + $0x698] sm:$0xff]
  %v439 = vld [vmem:[%s3 + $0x6a0] sm:$0xff]
  %v440 = vld [vmem:[%s3 + $0x6a8] sm:$0xf]
  %v441 = vld [vmem:[%s3 + $0x6ac] sm:$0xff]
  %v442 = vld [vmem:[%s3 + $0x6b4] sm:$0xff]
  %v443 = vld [vmem:[%s3 + $0x6bc] sm:$0xff]
  %v444 = vld [vmem:[%s3 + $0x6c4] sm:$0xf]
  %v445 = vld [vmem:[%s3 + $0x6c8] sm:$0xff]
  %v446 = vld [vmem:[%s3 + $0x6d0] sm:$0xff]
  %v447 = vld [vmem:[%s3 + $0x6d8] sm:$0xff]
  %v448 = vld [vmem:[%s3 + $0x6e0] sm:$0xf]
  %v449 = vld [vmem:[%s3 + $0x6e4] sm:$0xff]
  %v450 = vld [vmem:[%s3 + $0x6ec] sm:$0xff]
  %v451 = vld [vmem:[%s3 + $0x6f4] sm:$0xff]
  %v452 = vld [vmem:[%s3 + $0x6fc] sm:$0xf]
  %v453 = vld [vmem:[%s4] sm:$0x7f]
  %v455 = vlaneseq
  %v456 = vshrl.u32 %v455, 7
  %v457 = vsub.s32 0, %v456
  %v458 = vrot.slane %v453, %v457
  %v459 = vlaneseq
  %v460 = vshrl.u32 %v459, 7
  %v461 = vsub.s32 1, %v460
  %v462 = vrot.slane %v453, %v461
  %v463 = vlaneseq
  %v464 = vshrl.u32 %v463, 7
  %v465 = vsub.s32 2, %v464
  %v466 = vrot.slane %v453, %v465
  %v467 = vlaneseq
  %v468 = vshrl.u32 %v467, 7
  %v469 = vsub.s32 3, %v468
  %v470 = vrot.slane %v453, %v469
  %v471 = vlaneseq
  %v472 = vshrl.u32 %v471, 7
  %v473 = vsub.s32 4, %v472
  %v474 = vrot.slane %v453, %v473
  %v475 = vlaneseq
  %v476 = vshrl.u32 %v475, 7
  %v477 = vsub.s32 5, %v476
  %v478 = vrot.slane %v453, %v477
  %v479 = vlaneseq
  %v480 = vshrl.u32 %v479, 7
  %v481 = vsub.s32 6, %v480
  %v482 = vrot.slane %v453, %v481
  %v746 = vunpack.c.l.b16 %v197
  %v747 = vunpack.c.h.b16 %v197
  %v748 = vunpack.c.l.b16 %v198
  %v749 = vunpack.c.h.b16 %v198
  %v750 = vunpack.c.l.b16 %v199
  %v751 = vunpack.c.h.b16 %v199
  %v752 = vunpack.c.l.b16 %v200
  %v753 = vunpack.c.l.b16 %v201
  %v754 = vunpack.c.h.b16 %v201
  %v755 = vunpack.c.l.b16 %v202
  %v756 = vunpack.c.h.b16 %v202
  %v757 = vunpack.c.l.b16 %v203
  %v758 = vunpack.c.h.b16 %v203
  %v759 = vunpack.c.l.b16 %v204
  %v760 = vunpack.c.l.b16 %v205
  %v761 = vunpack.c.h.b16 %v205
  %v762 = vunpack.c.l.b16 %v206
  %v763 = vunpack.c.h.b16 %v206
  %v764 = vunpack.c.l.b16 %v207
  %v765 = vunpack.c.h.b16 %v207
  %v766 = vunpack.c.l.b16 %v208
  %v767 = vunpack.c.l.b16 %v209
  %v768 = vunpack.c.h.b16 %v209
  %v769 = vunpack.c.l.b16 %v210
  %v770 = vunpack.c.h.b16 %v210
  %v771 = vunpack.c.l.b16 %v211
  %v772 = vunpack.c.h.b16 %v211
  %v773 = vunpack.c.l.b16 %v212
  %v774 = vunpack.c.l.b16 %v213
  %v775 = vunpack.c.h.b16 %v213
  %v776 = vunpack.c.l.b16 %v214
  %v777 = vunpack.c.h.b16 %v214
  %v778 = vunpack.c.l.b16 %v215
  %v779 = vunpack.c.h.b16 %v215
  %v780 = vunpack.c.l.b16 %v216
  %v781 = vunpack.c.l.b16 %v217
  %v782 = vunpack.c.h.b16 %v217
  %v783 = vunpack.c.l.b16 %v218
  %v784 = vunpack.c.h.b16 %v218
  %v785 = vunpack.c.l.b16 %v219
  %v786 = vunpack.c.h.b16 %v219
  %v787 = vunpack.c.l.b16 %v220
  %v788 = vunpack.c.l.b16 %v221
  %v789 = vunpack.c.h.b16 %v221
  %v790 = vunpack.c.l.b16 %v222
  %v791 = vunpack.c.h.b16 %v222
  %v792 = vunpack.c.l.b16 %v223
  %v793 = vunpack.c.h.b16 %v223
  %v794 = vunpack.c.l.b16 %v224
  %v795 = vunpack.c.l.b16 %v225
  %v796 = vunpack.c.h.b16 %v225
  %v797 = vunpack.c.l.b16 %v226
  %v798 = vunpack.c.h.b16 %v226
  %v799 = vunpack.c.l.b16 %v227
  %v800 = vunpack.c.h.b16 %v227
  %v801 = vunpack.c.l.b16 %v228
  %v802 = vunpack.c.l.b16 %v229
  %v803 = vunpack.c.h.b16 %v229
  %v804 = vunpack.c.l.b16 %v230
  %v805 = vunpack.c.h.b16 %v230
  %v806 = vunpack.c.l.b16 %v231
  %v807 = vunpack.c.h.b16 %v231
  %v808 = vunpack.c.l.b16 %v232
  %v809 = vunpack.c.l.b16 %v233
  %v810 = vunpack.c.h.b16 %v233
  %v811 = vunpack.c.l.b16 %v234
  %v812 = vunpack.c.h.b16 %v234
  %v813 = vunpack.c.l.b16 %v235
  %v814 = vunpack.c.h.b16 %v235
  %v815 = vunpack.c.l.b16 %v236
  %v816 = vunpack.c.l.b16 %v237
  %v817 = vunpack.c.h.b16 %v237
  %v818 = vunpack.c.l.b16 %v238
  %v819 = vunpack.c.h.b16 %v238
  %v820 = vunpack.c.l.b16 %v239
  %v821 = vunpack.c.h.b16 %v239
  %v822 = vunpack.c.l.b16 %v240
  %v823 = vunpack.c.l.b16 %v241
  %v824 = vunpack.c.h.b16 %v241
  %v825 = vunpack.c.l.b16 %v242
  %v826 = vunpack.c.h.b16 %v242
  %v827 = vunpack.c.l.b16 %v243
  %v828 = vunpack.c.h.b16 %v243
  %v829 = vunpack.c.l.b16 %v244
  %v830 = vunpack.c.l.b16 %v245
  %v831 = vunpack.c.h.b16 %v245
  %v832 = vunpack.c.l.b16 %v246
  %v833 = vunpack.c.h.b16 %v246
  %v834 = vunpack.c.l.b16 %v247
  %v835 = vunpack.c.h.b16 %v247
  %v836 = vunpack.c.l.b16 %v248
  %v837 = vunpack.c.l.b16 %v249
  %v838 = vunpack.c.h.b16 %v249
  %v839 = vunpack.c.l.b16 %v250
  %v840 = vunpack.c.h.b16 %v250
  %v841 = vunpack.c.l.b16 %v251
  %v842 = vunpack.c.h.b16 %v251
  %v843 = vunpack.c.l.b16 %v252
  %v844 = vunpack.c.l.b16 %v253
  %v845 = vunpack.c.h.b16 %v253
  %v846 = vunpack.c.l.b16 %v254
  %v847 = vunpack.c.h.b16 %v254
  %v848 = vunpack.c.l.b16 %v255
  %v849 = vunpack.c.h.b16 %v255
  %v850 = vunpack.c.l.b16 %v256
  %v851 = vunpack.c.l.b16 %v257
  %v852 = vunpack.c.h.b16 %v257
  %v853 = vunpack.c.l.b16 %v258
  %v854 = vunpack.c.h.b16 %v258
  %v855 = vunpack.c.l.b16 %v259
  %v856 = vunpack.c.h.b16 %v259
  %v857 = vunpack.c.l.b16 %v260
  %v858 = vunpack.c.l.b16 %v261
  %v859 = vunpack.c.h.b16 %v261
  %v860 = vunpack.c.l.b16 %v262
  %v861 = vunpack.c.h.b16 %v262
  %v862 = vunpack.c.l.b16 %v263
  %v863 = vunpack.c.h.b16 %v263
  %v864 = vunpack.c.l.b16 %v264
  %v865 = vunpack.c.l.b16 %v265
  %v866 = vunpack.c.h.b16 %v265
  %v867 = vunpack.c.l.b16 %v266
  %v868 = vunpack.c.h.b16 %v266
  %v869 = vunpack.c.l.b16 %v267
  %v870 = vunpack.c.h.b16 %v267
  %v871 = vunpack.c.l.b16 %v268
  %v872 = vunpack.c.l.b16 %v269
  %v873 = vunpack.c.h.b16 %v269
  %v874 = vunpack.c.l.b16 %v270
  %v875 = vunpack.c.h.b16 %v270
  %v876 = vunpack.c.l.b16 %v271
  %v877 = vunpack.c.h.b16 %v271
  %v878 = vunpack.c.l.b16 %v272
  %v879 = vunpack.c.l.b16 %v273
  %v880 = vunpack.c.h.b16 %v273
  %v881 = vunpack.c.l.b16 %v274
  %v882 = vunpack.c.h.b16 %v274
  %v883 = vunpack.c.l.b16 %v275
  %v884 = vunpack.c.h.b16 %v275
  %v885 = vunpack.c.l.b16 %v276
  %v886 = vunpack.c.l.b16 %v277
  %v887 = vunpack.c.h.b16 %v277
  %v888 = vunpack.c.l.b16 %v278
  %v889 = vunpack.c.h.b16 %v278
  %v890 = vunpack.c.l.b16 %v279
  %v891 = vunpack.c.h.b16 %v279
  %v892 = vunpack.c.l.b16 %v280
  %v893 = vunpack.c.l.b16 %v281
  %v894 = vunpack.c.h.b16 %v281
  %v895 = vunpack.c.l.b16 %v282
  %v896 = vunpack.c.h.b16 %v282
  %v897 = vunpack.c.l.b16 %v283
  %v898 = vunpack.c.h.b16 %v283
  %v899 = vunpack.c.l.b16 %v284
  %v900 = vunpack.c.l.b16 %v285
  %v901 = vunpack.c.h.b16 %v285
  %v902 = vunpack.c.l.b16 %v286
  %v903 = vunpack.c.h.b16 %v286
  %v904 = vunpack.c.l.b16 %v287
  %v905 = vunpack.c.h.b16 %v287
  %v906 = vunpack.c.l.b16 %v288
  %v907 = vunpack.c.l.b16 %v289
  %v908 = vunpack.c.h.b16 %v289
  %v909 = vunpack.c.l.b16 %v290
  %v910 = vunpack.c.h.b16 %v290
  %v911 = vunpack.c.l.b16 %v291
  %v912 = vunpack.c.h.b16 %v291
  %v913 = vunpack.c.l.b16 %v292
  %v914 = vunpack.c.l.b16 %v293
  %v915 = vunpack.c.h.b16 %v293
  %v916 = vunpack.c.l.b16 %v294
  %v917 = vunpack.c.h.b16 %v294
  %v918 = vunpack.c.l.b16 %v295
  %v919 = vunpack.c.h.b16 %v295
  %v920 = vunpack.c.l.b16 %v296
  %v921 = vunpack.c.l.b16 %v297
  %v922 = vunpack.c.h.b16 %v297
  %v923 = vunpack.c.l.b16 %v298
  %v924 = vunpack.c.h.b16 %v298
  %v925 = vunpack.c.l.b16 %v299
  %v926 = vunpack.c.h.b16 %v299
  %v927 = vunpack.c.l.b16 %v300
  %v928 = vunpack.c.l.b16 %v301
  %v929 = vunpack.c.h.b16 %v301
  %v930 = vunpack.c.l.b16 %v302
  %v931 = vunpack.c.h.b16 %v302
  %v932 = vunpack.c.l.b16 %v303
  %v933 = vunpack.c.h.b16 %v303
  %v934 = vunpack.c.l.b16 %v304
  %v935 = vunpack.c.l.b16 %v305
  %v936 = vunpack.c.h.b16 %v305
  %v937 = vunpack.c.l.b16 %v306
  %v938 = vunpack.c.h.b16 %v306
  %v939 = vunpack.c.l.b16 %v307
  %v940 = vunpack.c.h.b16 %v307
  %v941 = vunpack.c.l.b16 %v308
  %v942 = vunpack.c.l.b16 %v309
  %v943 = vunpack.c.h.b16 %v309
  %v944 = vunpack.c.l.b16 %v310
  %v945 = vunpack.c.h.b16 %v310
  %v946 = vunpack.c.l.b16 %v311
  %v947 = vunpack.c.h.b16 %v311
  %v948 = vunpack.c.l.b16 %v312
  %v949 = vunpack.c.l.b16 %v313
  %v950 = vunpack.c.h.b16 %v313
  %v951 = vunpack.c.l.b16 %v314
  %v952 = vunpack.c.h.b16 %v314
  %v953 = vunpack.c.l.b16 %v315
  %v954 = vunpack.c.h.b16 %v315
  %v955 = vunpack.c.l.b16 %v316
  %v956 = vunpack.c.l.b16 %v317
  %v957 = vunpack.c.h.b16 %v317
  %v958 = vunpack.c.l.b16 %v318
  %v959 = vunpack.c.h.b16 %v318
  %v960 = vunpack.c.l.b16 %v319
  %v961 = vunpack.c.h.b16 %v319
  %v962 = vunpack.c.l.b16 %v320
  %v963 = vunpack.c.l.b16 %v321
  %v964 = vunpack.c.h.b16 %v321
  %v965 = vunpack.c.l.b16 %v322
  %v966 = vunpack.c.h.b16 %v322
  %v967 = vunpack.c.l.b16 %v323
  %v968 = vunpack.c.h.b16 %v323
  %v969 = vunpack.c.l.b16 %v324
  %v970 = vunpack.c.l.b16 %v325
  %v971 = vunpack.c.h.b16 %v325
  %v972 = vunpack.c.l.b16 %v326
  %v973 = vunpack.c.h.b16 %v326
  %v974 = vunpack.c.l.b16 %v327
  %v975 = vunpack.c.h.b16 %v327
  %v976 = vunpack.c.l.b16 %v328
  %v977 = vunpack.c.l.b16 %v329
  %v978 = vunpack.c.h.b16 %v329
  %v979 = vunpack.c.l.b16 %v330
  %v980 = vunpack.c.h.b16 %v330
  %v981 = vunpack.c.l.b16 %v331
  %v982 = vunpack.c.h.b16 %v331
  %v983 = vunpack.c.l.b16 %v332
  %v984 = vunpack.c.l.b16 %v333
  %v985 = vunpack.c.h.b16 %v333
  %v986 = vunpack.c.l.b16 %v334
  %v987 = vunpack.c.h.b16 %v334
  %v988 = vunpack.c.l.b16 %v335
  %v989 = vunpack.c.h.b16 %v335
  %v990 = vunpack.c.l.b16 %v336
  %v991 = vunpack.c.l.b16 %v337
  %v992 = vunpack.c.h.b16 %v337
  %v993 = vunpack.c.l.b16 %v338
  %v994 = vunpack.c.h.b16 %v338
  %v995 = vunpack.c.l.b16 %v339
  %v996 = vunpack.c.h.b16 %v339
  %v997 = vunpack.c.l.b16 %v340
  %v998 = vunpack.c.l.b16 %v341
  %v999 = vunpack.c.h.b16 %v341
  %v1000 = vunpack.c.l.b16 %v342
  %v1001 = vunpack.c.h.b16 %v342
  %v1002 = vunpack.c.l.b16 %v343
  %v1003 = vunpack.c.h.b16 %v343
  %v1004 = vunpack.c.l.b16 %v344
  %v1005 = vunpack.c.l.b16 %v345
  %v1006 = vunpack.c.h.b16 %v345
  %v1007 = vunpack.c.l.b16 %v346
  %v1008 = vunpack.c.h.b16 %v346
  %v1009 = vunpack.c.l.b16 %v347
  %v1010 = vunpack.c.h.b16 %v347
  %v1011 = vunpack.c.l.b16 %v348
  %v1012 = vunpack.c.l.b16 %v349
  %v1013 = vunpack.c.h.b16 %v349
  %v1014 = vunpack.c.l.b16 %v350
  %v1015 = vunpack.c.h.b16 %v350
  %v1016 = vunpack.c.l.b16 %v351
  %v1017 = vunpack.c.h.b16 %v351
  %v1018 = vunpack.c.l.b16 %v352
  %v1019 = vunpack.c.l.b16 %v353
  %v1020 = vunpack.c.h.b16 %v353
  %v1021 = vunpack.c.l.b16 %v354
  %v1022 = vunpack.c.h.b16 %v354
  %v1023 = vunpack.c.l.b16 %v355
  %v1024 = vunpack.c.h.b16 %v355
  %v1025 = vunpack.c.l.b16 %v356
  %v1026 = vunpack.c.l.b16 %v357
  %v1027 = vunpack.c.h.b16 %v357
  %v1028 = vunpack.c.l.b16 %v358
  %v1029 = vunpack.c.h.b16 %v358
  %v1030 = vunpack.c.l.b16 %v359
  %v1031 = vunpack.c.h.b16 %v359
  %v1032 = vunpack.c.l.b16 %v360
  %v1033 = vunpack.c.l.b16 %v361
  %v1034 = vunpack.c.h.b16 %v361
  %v1035 = vunpack.c.l.b16 %v362
  %v1036 = vunpack.c.h.b16 %v362
  %v1037 = vunpack.c.l.b16 %v363
  %v1038 = vunpack.c.h.b16 %v363
  %v1039 = vunpack.c.l.b16 %v364
  %v1040 = vunpack.c.l.b16 %v365
  %v1041 = vunpack.c.h.b16 %v365
  %v1042 = vunpack.c.l.b16 %v366
  %v1043 = vunpack.c.h.b16 %v366
  %v1044 = vunpack.c.l.b16 %v367
  %v1045 = vunpack.c.h.b16 %v367
  %v1046 = vunpack.c.l.b16 %v368
  %v1047 = vunpack.c.l.b16 %v369
  %v1048 = vunpack.c.h.b16 %v369
  %v1049 = vunpack.c.l.b16 %v370
  %v1050 = vunpack.c.h.b16 %v370
  %v1051 = vunpack.c.l.b16 %v371
  %v1052 = vunpack.c.h.b16 %v371
  %v1053 = vunpack.c.l.b16 %v372
  %v1054 = vunpack.c.l.b16 %v373
  %v1055 = vunpack.c.h.b16 %v373
  %v1056 = vunpack.c.l.b16 %v374
  %v1057 = vunpack.c.h.b16 %v374
  %v1058 = vunpack.c.l.b16 %v375
  %v1059 = vunpack.c.h.b16 %v375
  %v1060 = vunpack.c.l.b16 %v376
  %v1061 = vunpack.c.l.b16 %v377
  %v1062 = vunpack.c.h.b16 %v377
  %v1063 = vunpack.c.l.b16 %v378
  %v1064 = vunpack.c.h.b16 %v378
  %v1065 = vunpack.c.l.b16 %v379
  %v1066 = vunpack.c.h.b16 %v379
  %v1067 = vunpack.c.l.b16 %v380
  %v1068 = vunpack.c.l.b16 %v381
  %v1069 = vunpack.c.h.b16 %v381
  %v1070 = vunpack.c.l.b16 %v382
  %v1071 = vunpack.c.h.b16 %v382
  %v1072 = vunpack.c.l.b16 %v383
  %v1073 = vunpack.c.h.b16 %v383
  %v1074 = vunpack.c.l.b16 %v384
  %v1075 = vunpack.c.l.b16 %v385
  %v1076 = vunpack.c.h.b16 %v385
  %v1077 = vunpack.c.l.b16 %v386
  %v1078 = vunpack.c.h.b16 %v386
  %v1079 = vunpack.c.l.b16 %v387
  %v1080 = vunpack.c.h.b16 %v387
  %v1081 = vunpack.c.l.b16 %v388
  %v1082 = vunpack.c.l.b16 %v389
  %v1083 = vunpack.c.h.b16 %v389
  %v1084 = vunpack.c.l.b16 %v390
  %v1085 = vunpack.c.h.b16 %v390
  %v1086 = vunpack.c.l.b16 %v391
  %v1087 = vunpack.c.h.b16 %v391
  %v1088 = vunpack.c.l.b16 %v392
  %v1089 = vunpack.c.l.b16 %v393
  %v1090 = vunpack.c.h.b16 %v393
  %v1091 = vunpack.c.l.b16 %v394
  %v1092 = vunpack.c.h.b16 %v394
  %v1093 = vunpack.c.l.b16 %v395
  %v1094 = vunpack.c.h.b16 %v395
  %v1095 = vunpack.c.l.b16 %v396
  %v1096 = vunpack.c.l.b16 %v397
  %v1097 = vunpack.c.h.b16 %v397
  %v1098 = vunpack.c.l.b16 %v398
  %v1099 = vunpack.c.h.b16 %v398
  %v1100 = vunpack.c.l.b16 %v399
  %v1101 = vunpack.c.h.b16 %v399
  %v1102 = vunpack.c.l.b16 %v400
  %v1103 = vunpack.c.l.b16 %v401
  %v1104 = vunpack.c.h.b16 %v401
  %v1105 = vunpack.c.l.b16 %v402
  %v1106 = vunpack.c.h.b16 %v402
  %v1107 = vunpack.c.l.b16 %v403
  %v1108 = vunpack.c.h.b16 %v403
  %v1109 = vunpack.c.l.b16 %v404
  %v1110 = vunpack.c.l.b16 %v405
  %v1111 = vunpack.c.h.b16 %v405
  %v1112 = vunpack.c.l.b16 %v406
  %v1113 = vunpack.c.h.b16 %v406
  %v1114 = vunpack.c.l.b16 %v407
  %v1115 = vunpack.c.h.b16 %v407
  %v1116 = vunpack.c.l.b16 %v408
  %v1117 = vunpack.c.l.b16 %v409
  %v1118 = vunpack.c.h.b16 %v409
  %v1119 = vunpack.c.l.b16 %v410
  %v1120 = vunpack.c.h.b16 %v410
  %v1121 = vunpack.c.l.b16 %v411
  %v1122 = vunpack.c.h.b16 %v411
  %v1123 = vunpack.c.l.b16 %v412
  %v1124 = vunpack.c.l.b16 %v413
  %v1125 = vunpack.c.h.b16 %v413
  %v1126 = vunpack.c.l.b16 %v414
  %v1127 = vunpack.c.h.b16 %v414
  %v1128 = vunpack.c.l.b16 %v415
  %v1129 = vunpack.c.h.b16 %v415
  %v1130 = vunpack.c.l.b16 %v416
  %v1131 = vunpack.c.l.b16 %v417
  %v1132 = vunpack.c.h.b16 %v417
  %v1133 = vunpack.c.l.b16 %v418
  %v1134 = vunpack.c.h.b16 %v418
  %v1135 = vunpack.c.l.b16 %v419
  %v1136 = vunpack.c.h.b16 %v419
  %v1137 = vunpack.c.l.b16 %v420
  %v1138 = vunpack.c.l.b16 %v421
  %v1139 = vunpack.c.h.b16 %v421
  %v1140 = vunpack.c.l.b16 %v422
  %v1141 = vunpack.c.h.b16 %v422
  %v1142 = vunpack.c.l.b16 %v423
  %v1143 = vunpack.c.h.b16 %v423
  %v1144 = vunpack.c.l.b16 %v424
  %v1145 = vunpack.c.l.b16 %v425
  %v1146 = vunpack.c.h.b16 %v425
  %v1147 = vunpack.c.l.b16 %v426
  %v1148 = vunpack.c.h.b16 %v426
  %v1149 = vunpack.c.l.b16 %v427
  %v1150 = vunpack.c.h.b16 %v427
  %v1151 = vunpack.c.l.b16 %v428
  %v1152 = vunpack.c.l.b16 %v429
  %v1153 = vunpack.c.h.b16 %v429
  %v1154 = vunpack.c.l.b16 %v430
  %v1155 = vunpack.c.h.b16 %v430
  %v1156 = vunpack.c.l.b16 %v431
  %v1157 = vunpack.c.h.b16 %v431
  %v1158 = vunpack.c.l.b16 %v432
  %v1159 = vunpack.c.l.b16 %v433
  %v1160 = vunpack.c.h.b16 %v433
  %v1161 = vunpack.c.l.b16 %v434
  %v1162 = vunpack.c.h.b16 %v434
  %v1163 = vunpack.c.l.b16 %v435
  %v1164 = vunpack.c.h.b16 %v435
  %v1165 = vunpack.c.l.b16 %v436
  %v1166 = vunpack.c.l.b16 %v437
  %v1167 = vunpack.c.h.b16 %v437
  %v1168 = vunpack.c.l.b16 %v438
  %v1169 = vunpack.c.h.b16 %v438
  %v1170 = vunpack.c.l.b16 %v439
  %v1171 = vunpack.c.h.b16 %v439
  %v1172 = vunpack.c.l.b16 %v440
  %v1173 = vunpack.c.l.b16 %v441
  %v1174 = vunpack.c.h.b16 %v441
  %v1175 = vunpack.c.l.b16 %v442
  %v1176 = vunpack.c.h.b16 %v442
  %v1177 = vunpack.c.l.b16 %v443
  %v1178 = vunpack.c.h.b16 %v443
  %v1179 = vunpack.c.l.b16 %v444
  %v1180 = vunpack.c.l.b16 %v445
  %v1181 = vunpack.c.h.b16 %v445
  %v1182 = vunpack.c.l.b16 %v446
  %v1183 = vunpack.c.h.b16 %v446
  %v1184 = vunpack.c.l.b16 %v447
  %v1185 = vunpack.c.h.b16 %v447
  %v1186 = vunpack.c.l.b16 %v448
  %v1187 = vunpack.c.l.b16 %v449
  %v1188 = vunpack.c.h.b16 %v449
  %v1189 = vunpack.c.l.b16 %v450
  %v1190 = vunpack.c.h.b16 %v450
  %v1191 = vunpack.c.l.b16 %v451
  %v1192 = vunpack.c.h.b16 %v451
  %v1193 = vunpack.c.l.b16 %v452
  %v1194 = vpack.c.b16 %v753, %v746
  %v1195 = vpack.c.b16 %v754, %v747
  %v1196 = vpack.c.b16 %v755, %v748
  %v1197 = vpack.c.b16 %v756, %v749
  %v1198 = vpack.c.b16 %v757, %v750
  %v1199 = vpack.c.b16 %v758, %v751
  %v1200 = vpack.c.b16 %v759, %v752
  %v1201 = vpack.c.b16 %v767, %v760
  %v1202 = vpack.c.b16 %v768, %v761
  %v1203 = vpack.c.b16 %v769, %v762
  %v1204 = vpack.c.b16 %v770, %v763
  %v1205 = vpack.c.b16 %v771, %v764
  %v1206 = vpack.c.b16 %v772, %v765
  %v1207 = vpack.c.b16 %v773, %v766
  %v1208 = vpack.c.b16 %v781, %v774
  %v1209 = vpack.c.b16 %v782, %v775
  %v1210 = vpack.c.b16 %v783, %v776
  %v1211 = vpack.c.b16 %v784, %v777
  %v1212 = vpack.c.b16 %v785, %v778
  %v1213 = vpack.c.b16 %v786, %v779
  %v1214 = vpack.c.b16 %v787, %v780
  %v1215 = vpack.c.b16 %v795, %v788
  %v1216 = vpack.c.b16 %v796, %v789
  %v1217 = vpack.c.b16 %v797, %v790
  %v1218 = vpack.c.b16 %v798, %v791
  %v1219 = vpack.c.b16 %v799, %v792
  %v1220 = vpack.c.b16 %v800, %v793
  %v1221 = vpack.c.b16 %v801, %v794
  %v1222 = vpack.c.b16 %v809, %v802
  %v1223 = vpack.c.b16 %v810, %v803
  %v1224 = vpack.c.b16 %v811, %v804
  %v1225 = vpack.c.b16 %v812, %v805
  %v1226 = vpack.c.b16 %v813, %v806
  %v1227 = vpack.c.b16 %v814, %v807
  %v1228 = vpack.c.b16 %v815, %v808
  %v1229 = vpack.c.b16 %v823, %v816
  %v1230 = vpack.c.b16 %v824, %v817
  %v1231 = vpack.c.b16 %v825, %v818
  %v1232 = vpack.c.b16 %v826, %v819
  %v1233 = vpack.c.b16 %v827, %v820
  %v1234 = vpack.c.b16 %v828, %v821
  %v1235 = vpack.c.b16 %v829, %v822
  %v1236 = vpack.c.b16 %v837, %v830
  %v1237 = vpack.c.b16 %v838, %v831
  %v1238 = vpack.c.b16 %v839, %v832
  %v1239 = vpack.c.b16 %v840, %v833
  %v1240 = vpack.c.b16 %v841, %v834
  %v1241 = vpack.c.b16 %v842, %v835
  %v1242 = vpack.c.b16 %v843, %v836
  %v1243 = vpack.c.b16 %v851, %v844
  %v1244 = vpack.c.b16 %v852, %v845
  %v1245 = vpack.c.b16 %v853, %v846
  %v1246 = vpack.c.b16 %v854, %v847
  %v1247 = vpack.c.b16 %v855, %v848
  %v1248 = vpack.c.b16 %v856, %v849
  %v1249 = vpack.c.b16 %v857, %v850
  %v1250 = vpack.c.b16 %v865, %v858
  %v1251 = vpack.c.b16 %v866, %v859
  %v1252 = vpack.c.b16 %v867, %v860
  %v1253 = vpack.c.b16 %v868, %v861
  %v1254 = vpack.c.b16 %v869, %v862
  %v1255 = vpack.c.b16 %v870, %v863
  %v1256 = vpack.c.b16 %v871, %v864
  %v1257 = vpack.c.b16 %v879, %v872
  %v1258 = vpack.c.b16 %v880, %v873
  %v1259 = vpack.c.b16 %v881, %v874
  %v1260 = vpack.c.b16 %v882, %v875
  %v1261 = vpack.c.b16 %v883, %v876
  %v1262 = vpack.c.b16 %v884, %v877
  %v1263 = vpack.c.b16 %v885, %v878
  %v1264 = vpack.c.b16 %v893, %v886
  %v1265 = vpack.c.b16 %v894, %v887
  %v1266 = vpack.c.b16 %v895, %v888
  %v1267 = vpack.c.b16 %v896, %v889
  %v1268 = vpack.c.b16 %v897, %v890
  %v1269 = vpack.c.b16 %v898, %v891
  %v1270 = vpack.c.b16 %v899, %v892
  %v1271 = vpack.c.b16 %v907, %v900
  %v1272 = vpack.c.b16 %v908, %v901
  %v1273 = vpack.c.b16 %v909, %v902
  %v1274 = vpack.c.b16 %v910, %v903
  %v1275 = vpack.c.b16 %v911, %v904
  %v1276 = vpack.c.b16 %v912, %v905
  %v1277 = vpack.c.b16 %v913, %v906
  %v1278 = vpack.c.b16 %v921, %v914
  %v1279 = vpack.c.b16 %v922, %v915
  %v1280 = vpack.c.b16 %v923, %v916
  %v1281 = vpack.c.b16 %v924, %v917
  %v1282 = vpack.c.b16 %v925, %v918
  %v1283 = vpack.c.b16 %v926, %v919
  %v1284 = vpack.c.b16 %v927, %v920
  %v1285 = vpack.c.b16 %v935, %v928
  %v1286 = vpack.c.b16 %v936, %v929
  %v1287 = vpack.c.b16 %v937, %v930
  %v1288 = vpack.c.b16 %v938, %v931
  %v1289 = vpack.c.b16 %v939, %v932
  %v1290 = vpack.c.b16 %v940, %v933
  %v1291 = vpack.c.b16 %v941, %v934
  %v1292 = vpack.c.b16 %v949, %v942
  %v1293 = vpack.c.b16 %v950, %v943
  %v1294 = vpack.c.b16 %v951, %v944
  %v1295 = vpack.c.b16 %v952, %v945
  %v1296 = vpack.c.b16 %v953, %v946
  %v1297 = vpack.c.b16 %v954, %v947
  %v1298 = vpack.c.b16 %v955, %v948
  %v1299 = vpack.c.b16 %v963, %v956
  %v1300 = vpack.c.b16 %v964, %v957
  %v1301 = vpack.c.b16 %v965, %v958
  %v1302 = vpack.c.b16 %v966, %v959
  %v1303 = vpack.c.b16 %v967, %v960
  %v1304 = vpack.c.b16 %v968, %v961
  %v1305 = vpack.c.b16 %v969, %v962
  %v1306 = vpack.c.b16 %v977, %v970
  %v1307 = vpack.c.b16 %v978, %v971
  %v1308 = vpack.c.b16 %v979, %v972
  %v1309 = vpack.c.b16 %v980, %v973
  %v1310 = vpack.c.b16 %v981, %v974
  %v1311 = vpack.c.b16 %v982, %v975
  %v1312 = vpack.c.b16 %v983, %v976
  %v1313 = vpack.c.b16 %v991, %v984
  %v1314 = vpack.c.b16 %v992, %v985
  %v1315 = vpack.c.b16 %v993, %v986
  %v1316 = vpack.c.b16 %v994, %v987
  %v1317 = vpack.c.b16 %v995, %v988
  %v1318 = vpack.c.b16 %v996, %v989
  %v1319 = vpack.c.b16 %v997, %v990
  %v1320 = vpack.c.b16 %v1005, %v998
  %v1321 = vpack.c.b16 %v1006, %v999
  %v1322 = vpack.c.b16 %v1007, %v1000
  %v1323 = vpack.c.b16 %v1008, %v1001
  %v1324 = vpack.c.b16 %v1009, %v1002
  %v1325 = vpack.c.b16 %v1010, %v1003
  %v1326 = vpack.c.b16 %v1011, %v1004
  %v1327 = vpack.c.b16 %v1019, %v1012
  %v1328 = vpack.c.b16 %v1020, %v1013
  %v1329 = vpack.c.b16 %v1021, %v1014
  %v1330 = vpack.c.b16 %v1022, %v1015
  %v1331 = vpack.c.b16 %v1023, %v1016
  %v1332 = vpack.c.b16 %v1024, %v1017
  %v1333 = vpack.c.b16 %v1025, %v1018
  %v1334 = vpack.c.b16 %v1033, %v1026
  %v1335 = vpack.c.b16 %v1034, %v1027
  %v1336 = vpack.c.b16 %v1035, %v1028
  %v1337 = vpack.c.b16 %v1036, %v1029
  %v1338 = vpack.c.b16 %v1037, %v1030
  %v1339 = vpack.c.b16 %v1038, %v1031
  %v1340 = vpack.c.b16 %v1039, %v1032
  %v1341 = vpack.c.b16 %v1047, %v1040
  %v1342 = vpack.c.b16 %v1048, %v1041
  %v1343 = vpack.c.b16 %v1049, %v1042
  %v1344 = vpack.c.b16 %v1050, %v1043
  %v1345 = vpack.c.b16 %v1051, %v1044
  %v1346 = vpack.c.b16 %v1052, %v1045
  %v1347 = vpack.c.b16 %v1053, %v1046
  %v1348 = vpack.c.b16 %v1061, %v1054
  %v1349 = vpack.c.b16 %v1062, %v1055
  %v1350 = vpack.c.b16 %v1063, %v1056
  %v1351 = vpack.c.b16 %v1064, %v1057
  %v1352 = vpack.c.b16 %v1065, %v1058
  %v1353 = vpack.c.b16 %v1066, %v1059
  %v1354 = vpack.c.b16 %v1067, %v1060
  %v1355 = vpack.c.b16 %v1075, %v1068
  %v1356 = vpack.c.b16 %v1076, %v1069
  %v1357 = vpack.c.b16 %v1077, %v1070
  %v1358 = vpack.c.b16 %v1078, %v1071
  %v1359 = vpack.c.b16 %v1079, %v1072
  %v1360 = vpack.c.b16 %v1080, %v1073
  %v1361 = vpack.c.b16 %v1081, %v1074
  %v1362 = vpack.c.b16 %v1089, %v1082
  %v1363 = vpack.c.b16 %v1090, %v1083
  %v1364 = vpack.c.b16 %v1091, %v1084
  %v1365 = vpack.c.b16 %v1092, %v1085
  %v1366 = vpack.c.b16 %v1093, %v1086
  %v1367 = vpack.c.b16 %v1094, %v1087
  %v1368 = vpack.c.b16 %v1095, %v1088
  %v1369 = vpack.c.b16 %v1103, %v1096
  %v1370 = vpack.c.b16 %v1104, %v1097
  %v1371 = vpack.c.b16 %v1105, %v1098
  %v1372 = vpack.c.b16 %v1106, %v1099
  %v1373 = vpack.c.b16 %v1107, %v1100
  %v1374 = vpack.c.b16 %v1108, %v1101
  %v1375 = vpack.c.b16 %v1109, %v1102
  %v1376 = vpack.c.b16 %v1117, %v1110
  %v1377 = vpack.c.b16 %v1118, %v1111
  %v1378 = vpack.c.b16 %v1119, %v1112
  %v1379 = vpack.c.b16 %v1120, %v1113
  %v1380 = vpack.c.b16 %v1121, %v1114
  %v1381 = vpack.c.b16 %v1122, %v1115
  %v1382 = vpack.c.b16 %v1123, %v1116
  %v1383 = vpack.c.b16 %v1131, %v1124
  %v1384 = vpack.c.b16 %v1132, %v1125
  %v1385 = vpack.c.b16 %v1133, %v1126
  %v1386 = vpack.c.b16 %v1134, %v1127
  %v1387 = vpack.c.b16 %v1135, %v1128
  %v1388 = vpack.c.b16 %v1136, %v1129
  %v1389 = vpack.c.b16 %v1137, %v1130
  %v1390 = vpack.c.b16 %v1145, %v1138
  %v1391 = vpack.c.b16 %v1146, %v1139
  %v1392 = vpack.c.b16 %v1147, %v1140
  %v1393 = vpack.c.b16 %v1148, %v1141
  %v1394 = vpack.c.b16 %v1149, %v1142
  %v1395 = vpack.c.b16 %v1150, %v1143
  %v1396 = vpack.c.b16 %v1151, %v1144
  %v1397 = vpack.c.b16 %v1159, %v1152
  %v1398 = vpack.c.b16 %v1160, %v1153
  %v1399 = vpack.c.b16 %v1161, %v1154
  %v1400 = vpack.c.b16 %v1162, %v1155
  %v1401 = vpack.c.b16 %v1163, %v1156
  %v1402 = vpack.c.b16 %v1164, %v1157
  %v1403 = vpack.c.b16 %v1165, %v1158
  %v1404 = vpack.c.b16 %v1173, %v1166
  %v1405 = vpack.c.b16 %v1174, %v1167
  %v1406 = vpack.c.b16 %v1175, %v1168
  %v1407 = vpack.c.b16 %v1176, %v1169
  %v1408 = vpack.c.b16 %v1177, %v1170
  %v1409 = vpack.c.b16 %v1178, %v1171
  %v1410 = vpack.c.b16 %v1179, %v1172
  %v1411 = vpack.c.b16 %v1187, %v1180
  %v1412 = vpack.c.b16 %v1188, %v1181
  %v1413 = vpack.c.b16 %v1189, %v1182
  %v1414 = vpack.c.b16 %v1190, %v1183
  %v1415 = vpack.c.b16 %v1191, %v1184
  %v1416 = vpack.c.b16 %v1192, %v1185
  %v1417 = vpack.c.b16 %v1193, %v1186
  %1642 = vmatprep.subr.bf16.mxu0 %v1244
  %1643 = vmatpush1.bf16.msra.mxu0 %v1243
  %1644 = vmatprep.subr.bf16.mxu0 %v1237
  %1645 = vmatpush1.bf16.msra.mxu0 %v1236
  %1646 = vmatprep.subr.bf16.mxu0 %v1230
  %1647 = vmatpush1.bf16.msra.mxu0 %v1229
  %1648 = vmatprep.subr.bf16.mxu0 %v1223
  %1649 = vmatpush1.bf16.msra.mxu0 %v1222
  %1650 = vmatprep.subr.bf16.mxu0 %v1216
  %1651 = vmatpush1.bf16.msra.mxu0 %v1215
  %1652 = vmatprep.subr.bf16.mxu0 %v1209
  %1653 = vmatpush1.bf16.msra.mxu0 %v1208
  %1654 = vmatprep.subr.bf16.mxu0 %v1202
  %1655 = vmatpush1.bf16.msra.mxu0 %v1201
  %1656 = vmatprep.subr.bf16.mxu0 %v1195
  %1657 = vmatpush1.bf16.msra.mxu0 %v1194
  %1658 = vmatprep.subr.bf16.mxu0 %v1300
  %1659 = vmatpush2.bf16.msra.mxu0 %v1299
  %1660 = vmatprep.subr.bf16.mxu0 %v1293
  %1661 = vmatpush2.bf16.msra.mxu0 %v1292
  %1662 = vmatprep.subr.bf16.mxu0 %v1286
  %1663 = vmatpush2.bf16.msra.mxu0 %v1285
  %1664 = vmatprep.subr.bf16.mxu0 %v1279
  %1665 = vmatpush2.bf16.msra.mxu0 %v1278
  %1666 = vmatprep.subr.bf16.mxu0 %v1272
  %1667 = vmatpush2.bf16.msra.mxu0 %v1271
  %1668 = vmatprep.subr.bf16.mxu0 %v1265
  %1669 = vmatpush2.bf16.msra.mxu0 %v1264
  %1670 = vmatprep.subr.bf16.mxu0 %v1258
  %1671 = vmatpush2.bf16.msra.mxu0 %v1257
  %1672 = vmatprep.subr.bf16.mxu0 %v1251
  %1673 = vmatpush2.bf16.msra.mxu0 %v1250
  %1674 = vmatprep.mubr.bf16.mxu0 %v194
  %1675 = vmatmul.mubr.bf16.gmra.mxu0 %v193
  %v1676 = vpop.f32.mrf.mxu0
  %v1677 = vadd.f32 %v458, %v1676
  %v1678 = vpop.f32.mrf.mxu0
  %v1679 = vadd.f32 %v462, %v1678
  %v1680 = vpop.f32.mrf.mxu0
  %v1681 = vadd.f32 %v458, %v1680
  %v1682 = vpop.f32.mrf.mxu0
  %v1683 = vadd.f32 %v462, %v1682
  %1684 = vdwg.mxu0
  %1685 = vmatprep.subr.bf16.mxu0 %v1356
  %1686 = vmatpush1.bf16.msra.mxu0 %v1355
  %1687 = vmatprep.subr.bf16.mxu0 %v1349
  %1688 = vmatpush1.bf16.msra.mxu0 %v1348
  %1689 = vmatprep.subr.bf16.mxu0 %v1342
  %1690 = vmatpush1.bf16.msra.mxu0 %v1341
  %1691 = vmatprep.subr.bf16.mxu0 %v1335
  %1692 = vmatpush1.bf16.msra.mxu0 %v1334
  %1693 = vmatprep.subr.bf16.mxu0 %v1328
  %1694 = vmatpush1.bf16.msra.mxu0 %v1327
  %1695 = vmatprep.subr.bf16.mxu0 %v1321
  %1696 = vmatpush1.bf16.msra.mxu0 %v1320
  %1697 = vmatprep.subr.bf16.mxu0 %v1314
  %1698 = vmatpush1.bf16.msra.mxu0 %v1313
  %1699 = vmatprep.subr.bf16.mxu0 %v1307
  %1700 = vmatpush1.bf16.msra.mxu0 %v1306
  %1701 = vmatprep.subr.bf16.mxu0 %v1412
  %1702 = vmatpush2.bf16.msra.mxu0 %v1411
  %1703 = vmatprep.subr.bf16.mxu0 %v1405
  %1704 = vmatpush2.bf16.msra.mxu0 %v1404
  %1705 = vmatprep.subr.bf16.mxu0 %v1398
  %1706 = vmatpush2.bf16.msra.mxu0 %v1397
  %1707 = vmatprep.subr.bf16.mxu0 %v1391
  %1708 = vmatpush2.bf16.msra.mxu0 %v1390
  %1709 = vmatprep.subr.bf16.mxu0 %v1384
  %1710 = vmatpush2.bf16.msra.mxu0 %v1383
  %1711 = vmatprep.subr.bf16.mxu0 %v1377
  %1712 = vmatpush2.bf16.msra.mxu0 %v1376
  %1713 = vmatprep.subr.bf16.mxu0 %v1370
  %1714 = vmatpush2.bf16.msra.mxu0 %v1369
  %1715 = vmatprep.subr.bf16.mxu0 %v1363
  %1716 = vmatpush2.bf16.msra.mxu0 %v1362
  %1717 = vmatprep.mubr.bf16.mxu0 %v196
  %1718 = vmatmul.mubr.bf16.gmra.mxu0 %v195
  %v1719 = vpop.f32.mrf.mxu0
  %v1720 = vadd.f32 %v1677, %v1719
  %v1721 = vpop.f32.mrf.mxu0
  %v1722 = vadd.f32 %v1679, %v1721
  %v1723 = vpop.f32.mrf.mxu0
  %v1724 = vadd.f32 %v1681, %v1723
  %v1725 = vpop.f32.mrf.mxu0
  %v1726 = vadd.f32 %v1683, %v1725
  %1727 = vdwg.mxu0
  %1728 = vmatprep.subr.bf16.mxu0 %v1246
  %1729 = vmatpush1.bf16.msra.mxu0 %v1245
  %1730 = vmatprep.subr.bf16.mxu0 %v1239
  %1731 = vmatpush1.bf16.msra.mxu0 %v1238
  %1732 = vmatprep.subr.bf16.mxu0 %v1232
  %1733 = vmatpush1.bf16.msra.mxu0 %v1231
  %1734 = vmatprep.subr.bf16.mxu0 %v1225
  %1735 = vmatpush1.bf16.msra.mxu0 %v1224
  %1736 = vmatprep.subr.bf16.mxu0 %v1218
  %1737 = vmatpush1.bf16.msra.mxu0 %v1217
  %1738 = vmatprep.subr.bf16.mxu0 %v1211
  %1739 = vmatpush1.bf16.msra.mxu0 %v1210
  %1740 = vmatprep.subr.bf16.mxu0 %v1204
  %1741 = vmatpush1.bf16.msra.mxu0 %v1203
  %1742 = vmatprep.subr.bf16.mxu0 %v1197
  %1743 = vmatpush1.bf16.msra.mxu0 %v1196
  %1744 = vmatprep.subr.bf16.mxu0 %v1302
  %1745 = vmatpush2.bf16.msra.mxu0 %v1301
  %1746 = vmatprep.subr.bf16.mxu0 %v1295
  %1747 = vmatpush2.bf16.msra.mxu0 %v1294
  %1748 = vmatprep.subr.bf16.mxu0 %v1288
  %1749 = vmatpush2.bf16.msra.mxu0 %v1287
  %1750 = vmatprep.subr.bf16.mxu0 %v1281
  %1751 = vmatpush2.bf16.msra.mxu0 %v1280
  %1752 = vmatprep.subr.bf16.mxu0 %v1274
  %1753 = vmatpush2.bf16.msra.mxu0 %v1273
  %1754 = vmatprep.subr.bf16.mxu0 %v1267
  %1755 = vmatpush2.bf16.msra.mxu0 %v1266
  %1756 = vmatprep.subr.bf16.mxu0 %v1260
  %1757 = vmatpush2.bf16.msra.mxu0 %v1259
  %1758 = vmatprep.subr.bf16.mxu0 %v1253
  %1759 = vmatpush2.bf16.msra.mxu0 %v1252
  %1760 = vmatprep.mubr.bf16.mxu0 %v194
  %1761 = vmatmul.mubr.bf16.gmra.mxu0 %v193
  %v1762 = vpop.f32.mrf.mxu0
  %v1763 = vadd.f32 %v466, %v1762
  %v1764 = vpop.f32.mrf.mxu0
  %v1765 = vadd.f32 %v470, %v1764
  %v1766 = vpop.f32.mrf.mxu0
  %v1767 = vadd.f32 %v466, %v1766
  %v1768 = vpop.f32.mrf.mxu0
  %v1769 = vadd.f32 %v470, %v1768
  %1770 = vdwg.mxu0
  %1771 = vmatprep.subr.bf16.mxu0 %v1358
  %1772 = vmatpush1.bf16.msra.mxu0 %v1357
  %1773 = vmatprep.subr.bf16.mxu0 %v1351
  %1774 = vmatpush1.bf16.msra.mxu0 %v1350
  %1775 = vmatprep.subr.bf16.mxu0 %v1344
  %1776 = vmatpush1.bf16.msra.mxu0 %v1343
  %1777 = vmatprep.subr.bf16.mxu0 %v1337
  %1778 = vmatpush1.bf16.msra.mxu0 %v1336
  %1779 = vmatprep.subr.bf16.mxu0 %v1330
  %1780 = vmatpush1.bf16.msra.mxu0 %v1329
  %1781 = vmatprep.subr.bf16.mxu0 %v1323
  %1782 = vmatpush1.bf16.msra.mxu0 %v1322
  %1783 = vmatprep.subr.bf16.mxu0 %v1316
  %1784 = vmatpush1.bf16.msra.mxu0 %v1315
  %1785 = vmatprep.subr.bf16.mxu0 %v1309
  %1786 = vmatpush1.bf16.msra.mxu0 %v1308
  %1787 = vmatprep.subr.bf16.mxu0 %v1414
  %1788 = vmatpush2.bf16.msra.mxu0 %v1413
  %1789 = vmatprep.subr.bf16.mxu0 %v1407
  %1790 = vmatpush2.bf16.msra.mxu0 %v1406
  %1791 = vmatprep.subr.bf16.mxu0 %v1400
  %1792 = vmatpush2.bf16.msra.mxu0 %v1399
  %1793 = vmatprep.subr.bf16.mxu0 %v1393
  %1794 = vmatpush2.bf16.msra.mxu0 %v1392
  %1795 = vmatprep.subr.bf16.mxu0 %v1386
  %1796 = vmatpush2.bf16.msra.mxu0 %v1385
  %1797 = vmatprep.subr.bf16.mxu0 %v1379
  %1798 = vmatpush2.bf16.msra.mxu0 %v1378
  %1799 = vmatprep.subr.bf16.mxu0 %v1372
  %1800 = vmatpush2.bf16.msra.mxu0 %v1371
  %1801 = vmatprep.subr.bf16.mxu0 %v1365
  %1802 = vmatpush2.bf16.msra.mxu0 %v1364
  %1803 = vmatprep.mubr.bf16.mxu0 %v196
  %1804 = vmatmul.mubr.bf16.gmra.mxu0 %v195
  %v1805 = vpop.f32.mrf.mxu0
  %v1806 = vadd.f32 %v1763, %v1805
  %v1807 = vpop.f32.mrf.mxu0
  %v1808 = vadd.f32 %v1765, %v1807
  %v1809 = vpop.f32.mrf.mxu0
  %v1810 = vadd.f32 %v1767, %v1809
  %v1811 = vpop.f32.mrf.mxu0
  %v1812 = vadd.f32 %v1769, %v1811
  %1813 = vdwg.mxu0
  %1814 = vmatprep.subr.bf16.mxu0 %v1248
  %1815 = vmatpush1.bf16.msra.mxu0 %v1247
  %1816 = vmatprep.subr.bf16.mxu0 %v1241
  %1817 = vmatpush1.bf16.msra.mxu0 %v1240
  %1818 = vmatprep.subr.bf16.mxu0 %v1234
  %1819 = vmatpush1.bf16.msra.mxu0 %v1233
  %1820 = vmatprep.subr.bf16.mxu0 %v1227
  %1821 = vmatpush1.bf16.msra.mxu0 %v1226
  %1822 = vmatprep.subr.bf16.mxu0 %v1220
  %1823 = vmatpush1.bf16.msra.mxu0 %v1219
  %1824 = vmatprep.subr.bf16.mxu0 %v1213
  %1825 = vmatpush1.bf16.msra.mxu0 %v1212
  %1826 = vmatprep.subr.bf16.mxu0 %v1206
  %1827 = vmatpush1.bf16.msra.mxu0 %v1205
  %1828 = vmatprep.subr.bf16.mxu0 %v1199
  %1829 = vmatpush1.bf16.msra.mxu0 %v1198
  %1830 = vmatprep.subr.bf16.mxu0 %v1304
  %1831 = vmatpush2.bf16.msra.mxu0 %v1303
  %1832 = vmatprep.subr.bf16.mxu0 %v1297
  %1833 = vmatpush2.bf16.msra.mxu0 %v1296
  %1834 = vmatprep.subr.bf16.mxu0 %v1290
  %1835 = vmatpush2.bf16.msra.mxu0 %v1289
  %1836 = vmatprep.subr.bf16.mxu0 %v1283
  %1837 = vmatpush2.bf16.msra.mxu0 %v1282
  %1838 = vmatprep.subr.bf16.mxu0 %v1276
  %1839 = vmatpush2.bf16.msra.mxu0 %v1275
  %1840 = vmatprep.subr.bf16.mxu0 %v1269
  %1841 = vmatpush2.bf16.msra.mxu0 %v1268
  %1842 = vmatprep.subr.bf16.mxu0 %v1262
  %1843 = vmatpush2.bf16.msra.mxu0 %v1261
  %1844 = vmatprep.subr.bf16.mxu0 %v1255
  %1845 = vmatpush2.bf16.msra.mxu0 %v1254
  %1846 = vmatprep.mubr.bf16.mxu0 %v194
  %1847 = vmatmul.mubr.bf16.gmra.mxu0 %v193
  %v1848 = vpop.f32.mrf.mxu0
  %v1849 = vadd.f32 %v474, %v1848
  %v1850 = vpop.f32.mrf.mxu0
  %v1851 = vadd.f32 %v478, %v1850
  %v1852 = vpop.f32.mrf.mxu0
  %v1853 = vadd.f32 %v474, %v1852
  %v1854 = vpop.f32.mrf.mxu0
  %v1855 = vadd.f32 %v478, %v1854
  %1856 = vdwg.mxu0
  %1857 = vmatprep.subr.bf16.mxu0 %v1360
  %1858 = vmatpush1.bf16.msra.mxu0 %v1359
  %1859 = vmatprep.subr.bf16.mxu0 %v1353
  %1860 = vmatpush1.bf16.msra.mxu0 %v1352
  %1861 = vmatprep.subr.bf16.mxu0 %v1346
  %1862 = vmatpush1.bf16.msra.mxu0 %v1345
  %1863 = vmatprep.subr.bf16.mxu0 %v1339
  %1864 = vmatpush1.bf16.msra.mxu0 %v1338
  %1865 = vmatprep.subr.bf16.mxu0 %v1332
  %1866 = vmatpush1.bf16.msra.mxu0 %v1331
  %1867 = vmatprep.subr.bf16.mxu0 %v1325
  %1868 = vmatpush1.bf16.msra.mxu0 %v1324
  %1869 = vmatprep.subr.bf16.mxu0 %v1318
  %1870 = vmatpush1.bf16.msra.mxu0 %v1317
  %1871 = vmatprep.subr.bf16.mxu0 %v1311
  %1872 = vmatpush1.bf16.msra.mxu0 %v1310
  %1873 = vmatprep.subr.bf16.mxu0 %v1416
  %1874 = vmatpush2.bf16.msra.mxu0 %v1415
  %1875 = vmatprep.subr.bf16.mxu0 %v1409
  %1876 = vmatpush2.bf16.msra.mxu0 %v1408
  %1877 = vmatprep.subr.bf16.mxu0 %v1402
  %1878 = vmatpush2.bf16.msra.mxu0 %v1401
  %1879 = vmatprep.subr.bf16.mxu0 %v1395
  %1880 = vmatpush2.bf16.msra.mxu0 %v1394
  %1881 = vmatprep.subr.bf16.mxu0 %v1388
  %1882 = vmatpush2.bf16.msra.mxu0 %v1387
  %1883 = vmatprep.subr.bf16.mxu0 %v1381
  %1884 = vmatpush2.bf16.msra.mxu0 %v1380
  %1885 = vmatprep.subr.bf16.mxu0 %v1374
  %1886 = vmatpush2.bf16.msra.mxu0 %v1373
  %1887 = vmatprep.subr.bf16.mxu0 %v1367
  %1888 = vmatpush2.bf16.msra.mxu0 %v1366
  %1889 = vmatprep.mubr.bf16.mxu0 %v196
  %1890 = vmatmul.mubr.bf16.gmra.mxu0 %v195
  %v1891 = vpop.f32.mrf.mxu0
  %v1892 = vadd.f32 %v1849, %v1891
  %v1893 = vpop.f32.mrf.mxu0
  %v1894 = vadd.f32 %v1851, %v1893
  %v1895 = vpop.f32.mrf.mxu0
  %v1896 = vadd.f32 %v1853, %v1895
  %v1897 = vpop.f32.mrf.mxu0
  %v1898 = vadd.f32 %v1855, %v1897
  %1899 = vdwg.mxu0
  %1900 = vmatprep.subr.bf16.mxu0 0
  %1901 = vmatpush1.bf16.msra.mxu0 %v1249
  %1902 = vmatprep.subr.bf16.mxu0 0
  %1903 = vmatpush1.bf16.msra.mxu0 %v1242
  %1904 = vmatprep.subr.bf16.mxu0 0
  %1905 = vmatpush1.bf16.msra.mxu0 %v1235
  %1906 = vmatprep.subr.bf16.mxu0 0
  %1907 = vmatpush1.bf16.msra.mxu0 %v1228
  %1908 = vmatprep.subr.bf16.mxu0 0
  %1909 = vmatpush1.bf16.msra.mxu0 %v1221
  %1910 = vmatprep.subr.bf16.mxu0 0
  %1911 = vmatpush1.bf16.msra.mxu0 %v1214
  %1912 = vmatprep.subr.bf16.mxu0 0
  %1913 = vmatpush1.bf16.msra.mxu0 %v1207
  %1914 = vmatprep.subr.bf16.mxu0 0
  %1915 = vmatpush1.bf16.msra.mxu0 %v1200
  %1916 = vmatprep.subr.bf16.mxu0 0
  %1917 = vmatpush2.bf16.msra.mxu0 %v1305
  %1918 = vmatprep.subr.bf16.mxu0 0
  %1919 = vmatpush2.bf16.msra.mxu0 %v1298
  %1920 = vmatprep.subr.bf16.mxu0 0
  %1921 = vmatpush2.bf16.msra.mxu0 %v1291
  %1922 = vmatprep.subr.bf16.mxu0 0
  %1923 = vmatpush2.bf16.msra.mxu0 %v1284
  %1924 = vmatprep.subr.bf16.mxu0 0
  %1925 = vmatpush2.bf16.msra.mxu0 %v1277
  %1926 = vmatprep.subr.bf16.mxu0 0
  %1927 = vmatpush2.bf16.msra.mxu0 %v1270
  %1928 = vmatprep.subr.bf16.mxu0 0
  %1929 = vmatpush2.bf16.msra.mxu0 %v1263
  %1930 = vmatprep.subr.bf16.mxu0 0
  %1931 = vmatpush2.bf16.msra.mxu0 %v1256
  %1932 = vmatprep.mubr.bf16.mxu0 %v194
  %1933 = vmatmul.mubr.bf16.gmra.mxu0 %v193
  %v1934 = vpop.f32.mrf.mxu0
  %v1935 = vadd.f32 %v482, %v1934
  %v1936 = vpop.f32.mrf.mxu0
  %v1937 = vpop.f32.mrf.mxu0
  %v1938 = vadd.f32 %v482, %v1937
  %v1939 = vpop.f32.mrf.mxu0
  %1940 = vdwg.mxu0
  %1941 = vmatprep.subr.bf16.mxu0 0
  %1942 = vmatpush1.bf16.msra.mxu0 %v1361
  %1943 = vmatprep.subr.bf16.mxu0 0
  %1944 = vmatpush1.bf16.msra.mxu0 %v1354
  %1945 = vmatprep.subr.bf16.mxu0 0
  %1946 = vmatpush1.bf16.msra.mxu0 %v1347
  %1947 = vmatprep.subr.bf16.mxu0 0
  %1948 = vmatpush1.bf16.msra.mxu0 %v1340
  %1949 = vmatprep.subr.bf16.mxu0 0
  %1950 = vmatpush1.bf16.msra.mxu0 %v1333
  %1951 = vmatprep.subr.bf16.mxu0 0
  %1952 = vmatpush1.bf16.msra.mxu0 %v1326
  %1953 = vmatprep.subr.bf16.mxu0 0
  %1954 = vmatpush1.bf16.msra.mxu0 %v1319
  %1955 = vmatprep.subr.bf16.mxu0 0
  %1956 = vmatpush1.bf16.msra.mxu0 %v1312
  %1957 = vmatprep.subr.bf16.mxu0 0
  %1958 = vmatpush2.bf16.msra.mxu0 %v1417
  %1959 = vmatprep.subr.bf16.mxu0 0
  %1960 = vmatpush2.bf16.msra.mxu0 %v1410
  %1961 = vmatprep.subr.bf16.mxu0 0
  %1962 = vmatpush2.bf16.msra.mxu0 %v1403
  %1963 = vmatprep.subr.bf16.mxu0 0
  %1964 = vmatpush2.bf16.msra.mxu0 %v1396
  %1965 = vmatprep.subr.bf16.mxu0 0
  %1966 = vmatpush2.bf16.msra.mxu0 %v1389
  %1967 = vmatprep.subr.bf16.mxu0 0
  %1968 = vmatpush2.bf16.msra.mxu0 %v1382
  %1969 = vmatprep.subr.bf16.mxu0 0
  %1970 = vmatpush2.bf16.msra.mxu0 %v1375
  %1971 = vmatprep.subr.bf16.mxu0 0
  %1972 = vmatpush2.bf16.msra.mxu0 %v1368
  %1973 = vmatprep.mubr.bf16.mxu0 %v196
  %1974 = vmatmul.mubr.bf16.gmra.mxu0 %v195
  %v1975 = vpop.f32.mrf.mxu0
  %v1976 = vadd.f32 %v1935, %v1975
  %v1977 = vpop.f32.mrf.mxu0
  %v1978 = vpop.f32.mrf.mxu0
  %v1979 = vadd.f32 %v1938, %v1978
  %v1980 = vpop.f32.mrf.mxu0
  %1981 = vdwg.mxu0
  %v1982 = vmul.f32 %v1720, 0.5
  %v1983 = vmul.f32 %v1722, 0.5
  %v1984 = vmul.f32 %v1806, 0.5
  %v1985 = vmul.f32 %v1808, 0.5
  %v1986 = vmul.f32 %v1892, 0.5
  %v1987 = vmul.f32 %v1894, 0.5
  %v1988 = vmul.f32 %v1976, 0.5
  %v1989 = vmul.f32 %v1724, 0.5
  %v1990 = vmul.f32 %v1726, 0.5
  %v1991 = vmul.f32 %v1810, 0.5
  %v1992 = vmul.f32 %v1812, 0.5
  %v1993 = vmul.f32 %v1896, 0.5
  %v1994 = vmul.f32 %v1898, 0.5
  %v1995 = vmul.f32 %v1979, 0.5
  %v1996 = vtanh.pop %v1982
  %v1997 = vtanh.pop %v1983
  %v1998 = vtanh.pop %v1984
  %v1999 = vtanh.pop %v1985
  %v2000 = vtanh.pop %v1986
  %v2001 = vtanh.pop %v1987
  %v2002 = vtanh.pop %v1988
  %v2003 = vtanh.pop %v1989
  %v2004 = vtanh.pop %v1990
  %v2005 = vtanh.pop %v1991
  %v2006 = vtanh.pop %v1992
  %v2007 = vtanh.pop %v1993
  %v2008 = vtanh.pop %v1994
  %v2009 = vtanh.pop %v1995
  %v2010 = vmul.f32 %v1996, 0.5
  %v2011 = vmul.f32 %v1997, 0.5
  %v2012 = vmul.f32 %v1998, 0.5
  %v2013 = vmul.f32 %v1999, 0.5
  %v2014 = vmul.f32 %v2000, 0.5
  %v2015 = vmul.f32 %v2001, 0.5
  %v2016 = vmul.f32 %v2002, 0.5
  %v2017 = vmul.f32 %v2003, 0.5
  %v2018 = vmul.f32 %v2004, 0.5
  %v2019 = vmul.f32 %v2005, 0.5
  %v2020 = vmul.f32 %v2006, 0.5
  %v2021 = vmul.f32 %v2007, 0.5
  %v2022 = vmul.f32 %v2008, 0.5
  %v2023 = vmul.f32 %v2009, 0.5
  %v2024 = vadd.f32 %v2010, 0.5
  %v2025 = vadd.f32 %v2011, 0.5
  %v2026 = vadd.f32 %v2012, 0.5
  %v2027 = vadd.f32 %v2013, 0.5
  %v2028 = vadd.f32 %v2014, 0.5
  %v2029 = vadd.f32 %v2015, 0.5
  %v2030 = vadd.f32 %v2016, 0.5
  %v2031 = vadd.f32 %v2017, 0.5
  %v2032 = vadd.f32 %v2018, 0.5
  %v2033 = vadd.f32 %v2019, 0.5
  %v2034 = vadd.f32 %v2020, 0.5
  %v2035 = vadd.f32 %v2021, 0.5
  %v2036 = vadd.f32 %v2022, 0.5
  %v2037 = vadd.f32 %v2023, 0.5
  %v2038 = vpack.c.bf16 %v2031, %v2024
  %v2039 = vpack.c.bf16 %v2032, %v2025
  %v2040 = vpack.c.bf16 %v2033, %v2026
  %v2041 = vpack.c.bf16 %v2034, %v2027
  %v2042 = vpack.c.bf16 %v2035, %v2028
  %v2043 = vpack.c.bf16 %v2036, %v2029
  %v2044 = vpack.c.bf16 %v2037, %v2030
  %v2052 = vunpack.c.l.b16 %v2038
  %v2053 = vunpack.c.l.b16 %v2039
  %v2054 = vunpack.c.l.b16 %v2040
  %v2055 = vunpack.c.l.b16 %v2041
  %v2056 = vunpack.c.l.b16 %v2042
  %v2057 = vunpack.c.l.b16 %v2043
  %v2058 = vunpack.c.l.b16 %v2044
  %v2059 = vunpack.c.h.b16 %v2038
  %v2060 = vunpack.c.h.b16 %v2039
  %v2061 = vunpack.c.h.b16 %v2040
  %v2062 = vunpack.c.h.b16 %v2041
  %v2063 = vunpack.c.h.b16 %v2042
  %v2064 = vunpack.c.h.b16 %v2043
  %v2065 = vunpack.c.h.b16 %v2044
  %v2066 = vpack.c.b16 %v2053, %v2052
  %v2067 = vpack.c.b16 %v2055, %v2054
  %v2068 = vpack.c.b16 %v2057, %v2056
  %v2069 = vpack.c.b16 %v2058, %v2058
  %v2070 = vpack.c.b16 %v2060, %v2059
  %v2071 = vpack.c.b16 %v2062, %v2061
  %v2072 = vpack.c.b16 %v2064, %v2063
  %v2073 = vpack.c.b16 %v2065, %v2065
  %2082 = vst [vmem:[%s5] sm:$0xff] %v2066
  %2083 = vst [vmem:[%s5 + $0x8] sm:$0xff] %v2067
  %2084 = vst [vmem:[%s5 + $0x10] sm:$0xff] %v2068
  %vm2085 = vcmask 125952
  %2086 = vst.msk [vmem:[%s5 + $0x18] sm:$0xf] %vm2085, %v2069
  %2087 = vst [vmem:[%s5 + $0x1c] sm:$0xff] %v2070
  %2088 = vst [vmem:[%s5 + $0x24] sm:$0xff] %v2071
  %2089 = vst [vmem:[%s5 + $0x2c] sm:$0xff] %v2072
  %2090 = vst.msk [vmem:[%s5 + $0x34] sm:$0xf] %vm2085, %v2073
  // Predicated region
  $region22: #{decoder_forward.1} parent=0 // pred_check
    _
  $region23: #{decoder_forward.1} parent=0 // pred_check_branch
    %2092 = sbr.rel (0) target = $region25
  $region24: #{decoder_forward.1} parent=0 // pred_region
    _
  $region25: #{decoder_forward.1} parent=0 // pred_fallthru
    _
  // Predicated region
  $region26: #{decoder_forward.1} parent=0 // pred_check
    _
  $region27: #{decoder_forward.1} parent=0 // pred_check_branch
    %2094 = sbr.rel (0) target = $region29
  $region28: #{decoder_forward.1} parent=0 // pred_region
    _
  $region29: #{decoder_forward.1} parent=0 // pred_fallthru
    _

</llo_original>
